<compile_context>
chip_gen: v6e
topology: v6e:2x2x1
jax: 0.10.0
libtpu: 0.0.40
codegen_flags: <defaults>
</compile_context>

<pallas_src>
import functools

import jax
import jax.numpy as jnp
from jax.experimental import pallas as pl
from jax.experimental.pallas import tpu as pltpu

LANE = 128


def _round_up(x, m):
    return (x + m - 1) // m * m


def _pad_last(x, size):
    pad = size - x.shape[-1]
    if pad == 0:
        return x
    cfg = [(0, 0)] * (x.ndim - 1) + [(0, pad)]
    return jnp.pad(x, cfg)


# ----------------------------------------------------------------------------
# Pallas kernels
# ----------------------------------------------------------------------------
def _conv_bn_relu_pool_kernel(p_ref, w_ref, b_ref, o_ref):
    # p_ref: (4, G, K)  bf16  im2col patches for the 4 pool-window corners
    # w_ref: (K, 128)   bf16  BN-scale-folded conv weights (lane padded w/ 0)
    # b_ref: (1, 128)   f32   folded BN shift (lane padded w/ 0)
    # o_ref: (G, 128)   bf16  pooled, ReLU'd conv output (channels in lanes)
    def corner(c):
        acc = jnp.dot(p_ref[c], w_ref[...], preferred_element_type=jnp.float32)
        return jnp.maximum(acc + b_ref[...], 0.0)

    y = jnp.maximum(jnp.maximum(corner(0), corner(1)),
                    jnp.maximum(corner(2), corner(3)))
    o_ref[...] = y.astype(o_ref.dtype)


def conv_bn_relu_pool(patches, w, b):
    # patches: (N, 4, G, K) bf16 ; w: (K, 128) bf16 ; b: (1, 128) f32
    N, _, G, K = patches.shape
    return pl.pallas_call(
        _conv_bn_relu_pool_kernel,
        out_shape=jax.ShapeDtypeStruct((N, G, LANE), jnp.bfloat16),
        grid=(N,),
        in_specs=[
            pl.BlockSpec((None, 4, G, K), lambda n: (n, 0, 0, 0)),
            pl.BlockSpec((K, LANE), lambda n: (0, 0)),
            pl.BlockSpec((1, LANE), lambda n: (0, 0)),
        ],
        out_specs=pl.BlockSpec((None, G, LANE), lambda n: (n, 0, 0)),
        compiler_params=pltpu.CompilerParams(
            dimension_semantics=("parallel",)),
    )(patches, w, b)


def _fc_stack_kernel(x_ref, w1_ref, b1_ref, w2_ref, b2_ref, w3_ref, b3_ref,
                     o_ref):
    # fc1 -> fc2 -> fc3, all VMEM-resident; no ReLU between layers (as in the
    # PyTorch forward). bf16 MXU operands, f32 accumulation / epilogue.
    h = jnp.dot(x_ref[...], w1_ref[...],
                preferred_element_type=jnp.float32) + b1_ref[...]
    h = jnp.dot(h.astype(jnp.bfloat16), w2_ref[...],
                preferred_element_type=jnp.float32) + b2_ref[...]
    h = jnp.dot(h.astype(jnp.bfloat16), w3_ref[...],
                preferred_element_type=jnp.float32) + b3_ref[...]
    o_ref[...] = h


def fc_stack(x, w1, b1, w2, b2, w3, b3):
    N, K = x.shape
    return pl.pallas_call(
        _fc_stack_kernel,
        out_shape=jax.ShapeDtypeStruct((N, LANE), jnp.float32),
        grid=(1,),
        in_specs=[
            pl.BlockSpec((N, K), lambda i: (0, 0)),
            pl.BlockSpec((K, LANE), lambda i: (0, 0)),
            pl.BlockSpec((1, LANE), lambda i: (0, 0)),
            pl.BlockSpec((LANE, LANE), lambda i: (0, 0)),
            pl.BlockSpec((1, LANE), lambda i: (0, 0)),
            pl.BlockSpec((LANE, LANE), lambda i: (0, 0)),
            pl.BlockSpec((1, LANE), lambda i: (0, 0)),
        ],
        out_specs=pl.BlockSpec((N, LANE), lambda i: (0, 0)),
        compiler_params=pltpu.CompilerParams(
            dimension_semantics=("arbitrary",)),
    )(x, w1, b1, w2, b2, w3, b3)


# ----------------------------------------------------------------------------
# Trace-time glue: channels-last im2col (pool-corner ordered), BN folding
# ----------------------------------------------------------------------------
def im2col_pool_corners(xh, kh, kw):
    # xh: (N, H, W, C) channels-last.  kxk valid conv, stride 1, then 2x2/2
    # max-pool.  Returns (N, 4, PH*PW, KH*KW*C): corner-major patches so the
    # pool becomes a max over the 4 leading blocks inside the kernel.
    N, H, W, C = xh.shape
    oh, ow = H - kh + 1, W - kw + 1
    ph, pw = oh // 2, ow // 2
    cols = []
    for i in range(kh):
        for j in range(kw):
            cols.append(xh[:, i:i + oh, j:j + ow, :])          # (N, oh, ow, C)
    pat = jnp.concatenate(cols, axis=-1)     # (N, oh, ow, kh*kw*C), [ki][kj][c]
    corners = []
    for di in range(2):
        for dj in range(2):
            corners.append(
                pat[:, di:2 * ph:2, dj:2 * pw:2, :].reshape(
                    N, ph * pw, kh * kw * C))
    return jnp.stack(corners, axis=1), ph, pw     # (N, 4, ph*pw, kh*kw*C)


def fold_conv_bn(w, b, gamma, beta, mean, var, eps=1e-5):
    # Conv2d + eval-mode BatchNorm2d folded into (weight, shift).
    # TODO(synk): training-mode BatchNorm (batch statistics) not implemented.
    oc, cin, kh, kw = w.shape
    scale = gamma / jnp.sqrt(var + eps)                              # (OC,)
    wmat = w.transpose(0, 2, 3, 1).reshape(oc, kh * kw * cin).T      # (K, OC)
    wmat = wmat * scale[None, :]
    shift = (b - mean) * scale + beta
    K = wmat.shape[0]
    Kp = _round_up(K, LANE)
    wp = jnp.zeros((Kp, LANE), jnp.float32).at[:K, :oc].set(wmat)
    sp = jnp.zeros((1, LANE), jnp.float32).at[0, :oc].set(shift)
    return wp.astype(jnp.bfloat16), sp, Kp


def fc_pad(w, b, k_pad):
    # torch Linear: y = x @ W.T + b, W is (out, in) -> lane-padded operands.
    out_f, in_f = w.shape
    wp = jnp.zeros((k_pad, LANE), jnp.float32).at[:in_f, :out_f].set(w.T)
    bp = jnp.zeros((1, LANE), jnp.float32).at[0, :out_f].set(b)
    return wp.astype(jnp.bfloat16), bp


# ----------------------------------------------------------------------------
# LeNet forward
# ----------------------------------------------------------------------------
def lenet_forward(x, p, num_classes=10):
    # x: (N, 3, 32, 32) NCHW float32 (PyTorch layout).
    assert num_classes <= LANE
    N = x.shape[0]
    xh = x.transpose(0, 2, 3, 1)                                # channels-last

    # conv1 + BN + ReLU + pool1 : one fused pallas_call
    w1p, s1p, k1p = fold_conv_bn(p["w1"], p["b1"], p["g1"], p["be1"],
                                 p["m1"], p["v1"])
    pat1, ph1, pw1 = im2col_pool_corners(xh, 5, 5)              # (N,4,196,75)
    pat1 = _pad_last(pat1, k1p).astype(jnp.bfloat16)            # (N,4,196,128)
    pooled1 = conv_bn_relu_pool(pat1, w1p, s1p)                 # (N,196,128)

    # conv2 + BN + ReLU + pool2 : one fused pallas_call
    w2p, s2p, k2p = fold_conv_bn(p["w2"], p["b2"], p["g2"], p["be2"],
                                 p["m2"], p["v2"])
    x2 = pooled1.reshape(N, ph1, pw1, LANE)[..., :6]            # (N,14,14,6)
    pat2, ph2, pw2 = im2col_pool_corners(x2, 5, 5)              # (N,4,25,150)
    pat2 = _pad_last(pat2, k2p).astype(jnp.bfloat16)            # (N,4,25,256)
    pooled2 = conv_bn_relu_pool(pat2, w2p, s2p)                 # (N,25,128)

    # flatten exactly like torch.reshape(x, (-1, 400)) on the NCHW tensor
    feat = pooled2.reshape(N, ph2, pw2, LANE)[..., :16]         # (N,5,5,16)
    feat = feat.transpose(0, 3, 1, 2).reshape(N, 16 * ph2 * pw2)  # (N,400)
    feat = _pad_last(feat, 512).astype(jnp.bfloat16)            # (N,512)

    # fc1 -> fc2 -> fc3 : one fused pallas_call
    fw1, fb1 = fc_pad(p["fw1"], p["fb1"], 512)
    fw2, fb2 = fc_pad(p["fw2"], p["fb2"], LANE)
    fw3, fb3 = fc_pad(p["fw3"], p["fb3"], LANE)
    out = fc_stack(feat, fw1, fb1, fw2, fb2, fw3, fb3)          # (N,128) f32
    return out[:, :num_classes]


# ----------------------------------------------------------------------------
# Parameter init (matches PyTorch module shapes)
# ----------------------------------------------------------------------------
def init_params(key, num_classes=10):
    def uni(k, shape, fan_in):
        bound = 1.0 / jnp.sqrt(float(fan_in))
        return jax.random.uniform(k, shape, jnp.float32, -bound, bound)

    ks = jax.random.split(key, 16)
    p = {}
    # conv1: Conv2d(3, 6, 5) + BatchNorm2d(6)
    p["w1"] = uni(ks[0], (6, 3, 5, 5), 3 * 25)
    p["b1"] = uni(ks[1], (6,), 3 * 25)
    p["g1"] = 1.0 + 0.1 * jax.random.normal(ks[2], (6,), jnp.float32)
    p["be1"] = 0.1 * jax.random.normal(ks[3], (6,), jnp.float32)
    p["m1"] = jnp.zeros((6,), jnp.float32)
    p["v1"] = jnp.ones((6,), jnp.float32)
    # conv2: Conv2d(6, 16, 5) + BatchNorm2d(16)
    p["w2"] = uni(ks[4], (16, 6, 5, 5), 6 * 25)
    p["b2"] = uni(ks[5], (16,), 6 * 25)
    p["g2"] = 1.0 + 0.1 * jax.random.normal(ks[6], (16,), jnp.float32)
    p["be2"] = 0.1 * jax.random.normal(ks[7], (16,), jnp.float32)
    p["m2"] = jnp.zeros((16,), jnp.float32)
    p["v2"] = jnp.ones((16,), jnp.float32)
    # fc layers
    p["fw1"] = uni(ks[8], (120, 400), 400)
    p["fb1"] = uni(ks[9], (120,), 400)
    p["fw2"] = uni(ks[10], (84, 120), 120)
    p["fb2"] = uni(ks[11], (84,), 120)
    p["fw3"] = uni(ks[12], (num_classes, 84), 84)
    p["fb3"] = uni(ks[13], (num_classes,), 84)
    return p


if __name__ == "__main__":
    key = jax.random.PRNGKey(0)
    k_x, k_p = jax.random.split(key)
    # fc1 expects 400 = 16*5*5 features -> image_size must be 32x32 (LeNet).
    x = jax.random.normal(k_x, (2, 3, 32, 32), jnp.float32)   # NCHW, batch=2
    params = init_params(k_p, num_classes=10)

    out = jax.jit(lenet_forward)(x, params)
    out = jax.block_until_ready(out)
    assert out.shape == (2, 10) and out.dtype == jnp.float32
    print("KERNEL_OK")
</pallas_src>

<mosaic_0001>
module attributes {stable_mosaic.version = 11 : i64} {
  func.func @_conv_bn_relu_pool_kernel(%arg0: i32, %arg1: memref<1x4x196x128xbf16, #tpu.memory_space<vmem>>, %arg2: memref<128x128xbf16, #tpu.memory_space<vmem>>, %arg3: memref<1x128xf32, #tpu.memory_space<vmem>>, %arg4: memref<1x196x128xbf16, #tpu.memory_space<vmem>>) attributes {dimension_semantics = [#tpu.dimension_semantics<parallel>], iteration_bounds = array<i64: 2>, scalar_prefetch = 0 : i64, scratch_operands = 0 : i64, tpu.core_type = #tpu.core_type<tc>, window_params = [{transform_indices = @transform_0, window_bounds = array<i64: 1, 4, 196, 128>}, {pipeline_mode = #tpu.pipeline_mode<synchronous>, transform_indices = @transform_1, window_bounds = array<i64: 128, 128>}, {pipeline_mode = #tpu.pipeline_mode<synchronous>, transform_indices = @transform_2, window_bounds = array<i64: 1, 128>}, {transform_indices = @transform_3, window_bounds = array<i64: 1, 196, 128>}]} {
    %c0 = arith.constant 0 : index
    %c0_0 = arith.constant 0 : index
    %c0_1 = arith.constant 0 : index
    %c0_2 = arith.constant 0 : index
    %0 = vector.load %arg1[%c0, %c0_0, %c0_1, %c0_2] : memref<1x4x196x128xbf16, #tpu.memory_space<vmem>>, vector<1x1x196x128xbf16>
    %1 = vector.shape_cast %0 : vector<1x1x196x128xbf16> to vector<196x128xbf16>
    %c0_3 = arith.constant 0 : index
    %c0_4 = arith.constant 0 : index
    %2 = vector.load %arg2[%c0_3, %c0_4] : memref<128x128xbf16, #tpu.memory_space<vmem>>, vector<128x128xbf16>
    %cst = arith.constant dense<0.000000e+00> : vector<196x128xf32>
    %3 = tpu.matmul %1, %2, %cst {dimension_numbers = #tpu.dot_dimension_numbers<[1], [0], [0], [1], [0, 0, 1, 1], [], []>} : vector<196x128xbf16>, vector<128x128xbf16>, vector<196x128xf32> -> vector<196x128xf32>
    %c0_5 = arith.constant 0 : index
    %c0_6 = arith.constant 0 : index
    %4 = vector.load %arg3[%c0_5, %c0_6] : memref<1x128xf32, #tpu.memory_space<vmem>>, vector<1x128xf32>
    %5 = vector.broadcast %4 : vector<1x128xf32> to vector<196x128xf32>
    %6 = arith.addf %3, %5 : vector<196x128xf32>
    %cst_7 = arith.constant 0.000000e+00 : f32
    %7 = vector.broadcast %cst_7 : f32 to vector<196x128xf32>
    %8 = arith.maximumf %6, %7 : vector<196x128xf32>
    %c0_8 = arith.constant 0 : index
    %c1 = arith.constant 1 : index
    %c0_9 = arith.constant 0 : index
    %c0_10 = arith.constant 0 : index
    %9 = vector.load %arg1[%c0_8, %c1, %c0_9, %c0_10] : memref<1x4x196x128xbf16, #tpu.memory_space<vmem>>, vector<1x1x196x128xbf16>
    %10 = vector.shape_cast %9 : vector<1x1x196x128xbf16> to vector<196x128xbf16>
    %c0_11 = arith.constant 0 : index
    %c0_12 = arith.constant 0 : index
    %11 = vector.load %arg2[%c0_11, %c0_12] : memref<128x128xbf16, #tpu.memory_space<vmem>>, vector<128x128xbf16>
    %cst_13 = arith.constant dense<0.000000e+00> : vector<196x128xf32>
    %12 = tpu.matmul %10, %11, %cst_13 {dimension_numbers = #tpu.dot_dimension_numbers<[1], [0], [0], [1], [0, 0, 1, 1], [], []>} : vector<196x128xbf16>, vector<128x128xbf16>, vector<196x128xf32> -> vector<196x128xf32>
    %c0_14 = arith.constant 0 : index
    %c0_15 = arith.constant 0 : index
    %13 = vector.load %arg3[%c0_14, %c0_15] : memref<1x128xf32, #tpu.memory_space<vmem>>, vector<1x128xf32>
    %14 = vector.broadcast %13 : vector<1x128xf32> to vector<196x128xf32>
    %15 = arith.addf %12, %14 : vector<196x128xf32>
    %cst_16 = arith.constant 0.000000e+00 : f32
    %16 = vector.broadcast %cst_16 : f32 to vector<196x128xf32>
    %17 = arith.maximumf %15, %16 : vector<196x128xf32>
    %18 = arith.maximumf %8, %17 : vector<196x128xf32>
    %c0_17 = arith.constant 0 : index
    %c2 = arith.constant 2 : index
    %c0_18 = arith.constant 0 : index
    %c0_19 = arith.constant 0 : index
    %19 = vector.load %arg1[%c0_17, %c2, %c0_18, %c0_19] : memref<1x4x196x128xbf16, #tpu.memory_space<vmem>>, vector<1x1x196x128xbf16>
    %20 = vector.shape_cast %19 : vector<1x1x196x128xbf16> to vector<196x128xbf16>
    %c0_20 = arith.constant 0 : index
    %c0_21 = arith.constant 0 : index
    %21 = vector.load %arg2[%c0_20, %c0_21] : memref<128x128xbf16, #tpu.memory_space<vmem>>, vector<128x128xbf16>
    %cst_22 = arith.constant dense<0.000000e+00> : vector<196x128xf32>
    %22 = tpu.matmul %20, %21, %cst_22 {dimension_numbers = #tpu.dot_dimension_numbers<[1], [0], [0], [1], [0, 0, 1, 1], [], []>} : vector<196x128xbf16>, vector<128x128xbf16>, vector<196x128xf32> -> vector<196x128xf32>
    %c0_23 = arith.constant 0 : index
    %c0_24 = arith.constant 0 : index
    %23 = vector.load %arg3[%c0_23, %c0_24] : memref<1x128xf32, #tpu.memory_space<vmem>>, vector<1x128xf32>
    %24 = vector.broadcast %23 : vector<1x128xf32> to vector<196x128xf32>
    %25 = arith.addf %22, %24 : vector<196x128xf32>
    %cst_25 = arith.constant 0.000000e+00 : f32
    %26 = vector.broadcast %cst_25 : f32 to vector<196x128xf32>
    %27 = arith.maximumf %25, %26 : vector<196x128xf32>
    %c0_26 = arith.constant 0 : index
    %c3 = arith.constant 3 : index
    %c0_27 = arith.constant 0 : index
    %c0_28 = arith.constant 0 : index
    %28 = vector.load %arg1[%c0_26, %c3, %c0_27, %c0_28] : memref<1x4x196x128xbf16, #tpu.memory_space<vmem>>, vector<1x1x196x128xbf16>
    %29 = vector.shape_cast %28 : vector<1x1x196x128xbf16> to vector<196x128xbf16>
    %c0_29 = arith.constant 0 : index
    %c0_30 = arith.constant 0 : index
    %30 = vector.load %arg2[%c0_29, %c0_30] : memref<128x128xbf16, #tpu.memory_space<vmem>>, vector<128x128xbf16>
    %cst_31 = arith.constant dense<0.000000e+00> : vector<196x128xf32>
    %31 = tpu.matmul %29, %30, %cst_31 {dimension_numbers = #tpu.dot_dimension_numbers<[1], [0], [0], [1], [0, 0, 1, 1], [], []>} : vector<196x128xbf16>, vector<128x128xbf16>, vector<196x128xf32> -> vector<196x128xf32>
    %c0_32 = arith.constant 0 : index
    %c0_33 = arith.constant 0 : index
    %32 = vector.load %arg3[%c0_32, %c0_33] : memref<1x128xf32, #tpu.memory_space<vmem>>, vector<1x128xf32>
    %33 = vector.broadcast %32 : vector<1x128xf32> to vector<196x128xf32>
    %34 = arith.addf %31, %33 : vector<196x128xf32>
    %cst_34 = arith.constant 0.000000e+00 : f32
    %35 = vector.broadcast %cst_34 : f32 to vector<196x128xf32>
    %36 = arith.maximumf %34, %35 : vector<196x128xf32>
    %37 = arith.maximumf %27, %36 : vector<196x128xf32>
    %38 = arith.maximumf %18, %37 : vector<196x128xf32>
    %39 = arith.truncf %38 : vector<196x128xf32> to vector<196x128xbf16>
    %c0_35 = arith.constant 0 : index
    %c0_36 = arith.constant 0 : index
    %c0_37 = arith.constant 0 : index
    %40 = vector.load %arg4[%c0_35, %c0_36, %c0_37] : memref<1x196x128xbf16, #tpu.memory_space<vmem>>, vector<1x196x128xbf16>
    %41 = vector.shape_cast %40 : vector<1x196x128xbf16> to vector<196x128xbf16>
    %42 = vector.shape_cast %39 : vector<196x128xbf16> to vector<1x196x128xbf16>
    tpu.vector_store %arg4[%c0_35, %c0_36, %c0_37], %42 {strides = array<i32>} : memref<1x196x128xbf16, #tpu.memory_space<vmem>>, vector<1x196x128xbf16>,
    return
  }
  func.func @transform_0(%arg0: i32) -> (i32, i32, i32, i32) {
    %c0_i32 = arith.constant 0 : i32
    %c0_i32_0 = arith.constant 0 : i32
    %c0_i32_1 = arith.constant 0 : i32
    %c0_i32_2 = arith.constant 0 : i32
    return %arg0, %c0_i32, %c0_i32_0, %c0_i32_1 : i32, i32, i32, i32
  }
  func.func @transform_1(%arg0: i32) -> (i32, i32) {
    %c0_i32 = arith.constant 0 : i32
    %c0_i32_0 = arith.constant 0 : i32
    %c0_i32_1 = arith.constant 0 : i32
    return %c0_i32, %c0_i32_0 : i32, i32
  }
  func.func @transform_2(%arg0: i32) -> (i32, i32) {
    %c0_i32 = arith.constant 0 : i32
    %c0_i32_0 = arith.constant 0 : i32
    %c0_i32_1 = arith.constant 0 : i32
    return %c0_i32, %c0_i32_0 : i32, i32
  }
  func.func @transform_3(%arg0: i32) -> (i32, i32, i32) {
    %c0_i32 = arith.constant 0 : i32
    %c0_i32_0 = arith.constant 0 : i32
    %c0_i32_1 = arith.constant 0 : i32
    return %arg0, %c0_i32, %c0_i32_0 : i32, i32, i32
  }
}

module attributes {stable_mosaic.version = 11 : i64} {
  func.func @_conv_bn_relu_pool_kernel(%arg0: i32, %arg1: memref<1x4x25x256xbf16, #tpu.memory_space<vmem>>, %arg2: memref<256x128xbf16, #tpu.memory_space<vmem>>, %arg3: memref<1x128xf32, #tpu.memory_space<vmem>>, %arg4: memref<1x25x128xbf16, #tpu.memory_space<vmem>>) attributes {dimension_semantics = [#tpu.dimension_semantics<parallel>], iteration_bounds = array<i64: 2>, scalar_prefetch = 0 : i64, scratch_operands = 0 : i64, tpu.core_type = #tpu.core_type<tc>, window_params = [{transform_indices = @transform_0, window_bounds = array<i64: 1, 4, 25, 256>}, {pipeline_mode = #tpu.pipeline_mode<synchronous>, transform_indices = @transform_1, window_bounds = array<i64: 256, 128>}, {pipeline_mode = #tpu.pipeline_mode<synchronous>, transform_indices = @transform_2, window_bounds = array<i64: 1, 128>}, {transform_indices = @transform_3, window_bounds = array<i64: 1, 25, 128>}]} {
    %c0 = arith.constant 0 : index
    %c0_0 = arith.constant 0 : index
    %c0_1 = arith.constant 0 : index
    %c0_2 = arith.constant 0 : index
    %0 = vector.load %arg1[%c0, %c0_0, %c0_1, %c0_2] : memref<1x4x25x256xbf16, #tpu.memory_space<vmem>>, vector<1x1x25x256xbf16>
    %1 = vector.shape_cast %0 : vector<1x1x25x256xbf16> to vector<25x256xbf16>
    %c0_3 = arith.constant 0 : index
    %c0_4 = arith.constant 0 : index
    %2 = vector.load %arg2[%c0_3, %c0_4] : memref<256x128xbf16, #tpu.memory_space<vmem>>, vector<256x128xbf16>
    %cst = arith.constant dense<0.000000e+00> : vector<25x128xf32>
    %3 = tpu.matmul %1, %2, %cst {dimension_numbers = #tpu.dot_dimension_numbers<[1], [0], [0], [1], [0, 0, 1, 1], [], []>} : vector<25x256xbf16>, vector<256x128xbf16>, vector<25x128xf32> -> vector<25x128xf32>
    %c0_5 = arith.constant 0 : index
    %c0_6 = arith.constant 0 : index
    %4 = vector.load %arg3[%c0_5, %c0_6] : memref<1x128xf32, #tpu.memory_space<vmem>>, vector<1x128xf32>
    %5 = vector.broadcast %4 : vector<1x128xf32> to vector<25x128xf32>
    %6 = arith.addf %3, %5 : vector<25x128xf32>
    %cst_7 = arith.constant 0.000000e+00 : f32
    %7 = vector.broadcast %cst_7 : f32 to vector<25x128xf32>
    %8 = arith.maximumf %6, %7 : vector<25x128xf32>
    %c0_8 = arith.constant 0 : index
    %c1 = arith.constant 1 : index
    %c0_9 = arith.constant 0 : index
    %c0_10 = arith.constant 0 : index
    %9 = vector.load %arg1[%c0_8, %c1, %c0_9, %c0_10] : memref<1x4x25x256xbf16, #tpu.memory_space<vmem>>, vector<1x1x25x256xbf16>
    %10 = vector.shape_cast %9 : vector<1x1x25x256xbf16> to vector<25x256xbf16>
    %c0_11 = arith.constant 0 : index
    %c0_12 = arith.constant 0 : index
    %11 = vector.load %arg2[%c0_11, %c0_12] : memref<256x128xbf16, #tpu.memory_space<vmem>>, vector<256x128xbf16>
    %cst_13 = arith.constant dense<0.000000e+00> : vector<25x128xf32>
    %12 = tpu.matmul %10, %11, %cst_13 {dimension_numbers = #tpu.dot_dimension_numbers<[1], [0], [0], [1], [0, 0, 1, 1], [], []>} : vector<25x256xbf16>, vector<256x128xbf16>, vector<25x128xf32> -> vector<25x128xf32>
    %c0_14 = arith.constant 0 : index
    %c0_15 = arith.constant 0 : index
    %13 = vector.load %arg3[%c0_14, %c0_15] : memref<1x128xf32, #tpu.memory_space<vmem>>, vector<1x128xf32>
    %14 = vector.broadcast %13 : vector<1x128xf32> to vector<25x128xf32>
    %15 = arith.addf %12, %14 : vector<25x128xf32>
    %cst_16 = arith.constant 0.000000e+00 : f32
    %16 = vector.broadcast %cst_16 : f32 to vector<25x128xf32>
    %17 = arith.maximumf %15, %16 : vector<25x128xf32>
    %18 = arith.maximumf %8, %17 : vector<25x128xf32>
    %c0_17 = arith.constant 0 : index
    %c2 = arith.constant 2 : index
    %c0_18 = arith.constant 0 : index
    %c0_19 = arith.constant 0 : index
    %19 = vector.load %arg1[%c0_17, %c2, %c0_18, %c0_19] : memref<1x4x25x256xbf16, #tpu.memory_space<vmem>>, vector<1x1x25x256xbf16>
    %20 = vector.shape_cast %19 : vector<1x1x25x256xbf16> to vector<25x256xbf16>
    %c0_20 = arith.constant 0 : index
    %c0_21 = arith.constant 0 : index
    %21 = vector.load %arg2[%c0_20, %c0_21] : memref<256x128xbf16, #tpu.memory_space<vmem>>, vector<256x128xbf16>
    %cst_22 = arith.constant dense<0.000000e+00> : vector<25x128xf32>
    %22 = tpu.matmul %20, %21, %cst_22 {dimension_numbers = #tpu.dot_dimension_numbers<[1], [0], [0], [1], [0, 0, 1, 1], [], []>} : vector<25x256xbf16>, vector<256x128xbf16>, vector<25x128xf32> -> vector<25x128xf32>
    %c0_23 = arith.constant 0 : index
    %c0_24 = arith.constant 0 : index
    %23 = vector.load %arg3[%c0_23, %c0_24] : memref<1x128xf32, #tpu.memory_space<vmem>>, vector<1x128xf32>
    %24 = vector.broadcast %23 : vector<1x128xf32> to vector<25x128xf32>
    %25 = arith.addf %22, %24 : vector<25x128xf32>
    %cst_25 = arith.constant 0.000000e+00 : f32
    %26 = vector.broadcast %cst_25 : f32 to vector<25x128xf32>
    %27 = arith.maximumf %25, %26 : vector<25x128xf32>
    %c0_26 = arith.constant 0 : index
    %c3 = arith.constant 3 : index
    %c0_27 = arith.constant 0 : index
    %c0_28 = arith.constant 0 : index
    %28 = vector.load %arg1[%c0_26, %c3, %c0_27, %c0_28] : memref<1x4x25x256xbf16, #tpu.memory_space<vmem>>, vector<1x1x25x256xbf16>
    %29 = vector.shape_cast %28 : vector<1x1x25x256xbf16> to vector<25x256xbf16>
    %c0_29 = arith.constant 0 : index
    %c0_30 = arith.constant 0 : index
    %30 = vector.load %arg2[%c0_29, %c0_30] : memref<256x128xbf16, #tpu.memory_space<vmem>>, vector<256x128xbf16>
    %cst_31 = arith.constant dense<0.000000e+00> : vector<25x128xf32>
    %31 = tpu.matmul %29, %30, %cst_31 {dimension_numbers = #tpu.dot_dimension_numbers<[1], [0], [0], [1], [0, 0, 1, 1], [], []>} : vector<25x256xbf16>, vector<256x128xbf16>, vector<25x128xf32> -> vector<25x128xf32>
    %c0_32 = arith.constant 0 : index
    %c0_33 = arith.constant 0 : index
    %32 = vector.load %arg3[%c0_32, %c0_33] : memref<1x128xf32, #tpu.memory_space<vmem>>, vector<1x128xf32>
    %33 = vector.broadcast %32 : vector<1x128xf32> to vector<25x128xf32>
    %34 = arith.addf %31, %33 : vector<25x128xf32>
    %cst_34 = arith.constant 0.000000e+00 : f32
    %35 = vector.broadcast %cst_34 : f32 to vector<25x128xf32>
    %36 = arith.maximumf %34, %35 : vector<25x128xf32>
    %37 = arith.maximumf %27, %36 : vector<25x128xf32>
    %38 = arith.maximumf %18, %37 : vector<25x128xf32>
    %39 = arith.truncf %38 : vector<25x128xf32> to vector<25x128xbf16>
    %c0_35 = arith.constant 0 : index
    %c0_36 = arith.constant 0 : index
    %c0_37 = arith.constant 0 : index
    %40 = vector.load %arg4[%c0_35, %c0_36, %c0_37] : memref<1x25x128xbf16, #tpu.memory_space<vmem>>, vector<1x25x128xbf16>
    %41 = vector.shape_cast %40 : vector<1x25x128xbf16> to vector<25x128xbf16>
    %42 = vector.shape_cast %39 : vector<25x128xbf16> to vector<1x25x128xbf16>
    tpu.vector_store %arg4[%c0_35, %c0_36, %c0_37], %42 {strides = array<i32>} : memref<1x25x128xbf16, #tpu.memory_space<vmem>>, vector<1x25x128xbf16>,
    return
  }
  func.func @transform_0(%arg0: i32) -> (i32, i32, i32, i32) {
    %c0_i32 = arith.constant 0 : i32
    %c0_i32_0 = arith.constant 0 : i32
    %c0_i32_1 = arith.constant 0 : i32
    %c0_i32_2 = arith.constant 0 : i32
    return %arg0, %c0_i32, %c0_i32_0, %c0_i32_1 : i32, i32, i32, i32
  }
  func.func @transform_1(%arg0: i32) -> (i32, i32) {
    %c0_i32 = arith.constant 0 : i32
    %c0_i32_0 = arith.constant 0 : i32
    %c0_i32_1 = arith.constant 0 : i32
    return %c0_i32, %c0_i32_0 : i32, i32
  }
  func.func @transform_2(%arg0: i32) -> (i32, i32) {
    %c0_i32 = arith.constant 0 : i32
    %c0_i32_0 = arith.constant 0 : i32
    %c0_i32_1 = arith.constant 0 : i32
    return %c0_i32, %c0_i32_0 : i32, i32
  }
  func.func @transform_3(%arg0: i32) -> (i32, i32, i32) {
    %c0_i32 = arith.constant 0 : i32
    %c0_i32_0 = arith.constant 0 : i32
    %c0_i32_1 = arith.constant 0 : i32
    return %arg0, %c0_i32, %c0_i32_0 : i32, i32, i32
  }
}

module attributes {stable_mosaic.version = 11 : i64} {
  func.func @_fc_stack_kernel(%arg0: i32, %arg1: memref<2x512xbf16, #tpu.memory_space<vmem>>, %arg2: memref<512x128xbf16, #tpu.memory_space<vmem>>, %arg3: memref<1x128xf32, #tpu.memory_space<vmem>>, %arg4: memref<128x128xbf16, #tpu.memory_space<vmem>>, %arg5: memref<1x128xf32, #tpu.memory_space<vmem>>, %arg6: memref<128x128xbf16, #tpu.memory_space<vmem>>, %arg7: memref<1x128xf32, #tpu.memory_space<vmem>>, %arg8: memref<2x128xf32, #tpu.memory_space<vmem>>) attributes {dimension_semantics = [#tpu.dimension_semantics<arbitrary>], iteration_bounds = array<i64: 1>, scalar_prefetch = 0 : i64, scratch_operands = 0 : i64, tpu.core_type = #tpu.core_type<tc>, window_params = [{pipeline_mode = #tpu.pipeline_mode<synchronous>, transform_indices = @transform_0, window_bounds = array<i64: 2, 512>}, {pipeline_mode = #tpu.pipeline_mode<synchronous>, transform_indices = @transform_1, window_bounds = array<i64: 512, 128>}, {pipeline_mode = #tpu.pipeline_mode<synchronous>, transform_indices = @transform_2, window_bounds = array<i64: 1, 128>}, {pipeline_mode = #tpu.pipeline_mode<synchronous>, transform_indices = @transform_3, window_bounds = array<i64: 128, 128>}, {pipeline_mode = #tpu.pipeline_mode<synchronous>, transform_indices = @transform_4, window_bounds = array<i64: 1, 128>}, {pipeline_mode = #tpu.pipeline_mode<synchronous>, transform_indices = @transform_5, window_bounds = array<i64: 128, 128>}, {pipeline_mode = #tpu.pipeline_mode<synchronous>, transform_indices = @transform_6, window_bounds = array<i64: 1, 128>}, {pipeline_mode = #tpu.pipeline_mode<synchronous>, transform_indices = @transform_7, window_bounds = array<i64: 2, 128>}]} {
    %c0 = arith.constant 0 : index
    %c0_0 = arith.constant 0 : index
    %0 = vector.load %arg1[%c0, %c0_0] : memref<2x512xbf16, #tpu.memory_space<vmem>>, vector<2x512xbf16>
    %c0_1 = arith.constant 0 : index
    %c0_2 = arith.constant 0 : index
    %1 = vector.load %arg2[%c0_1, %c0_2] : memref<512x128xbf16, #tpu.memory_space<vmem>>, vector<512x128xbf16>
    %cst = arith.constant dense<0.000000e+00> : vector<2x128xf32>
    %2 = tpu.matmul %0, %1, %cst {dimension_numbers = #tpu.dot_dimension_numbers<[1], [0], [0], [1], [0, 0, 1, 1], [], []>} : vector<2x512xbf16>, vector<512x128xbf16>, vector<2x128xf32> -> vector<2x128xf32>
    %c0_3 = arith.constant 0 : index
    %c0_4 = arith.constant 0 : index
    %3 = vector.load %arg3[%c0_3, %c0_4] : memref<1x128xf32, #tpu.memory_space<vmem>>, vector<1x128xf32>
    %4 = vector.broadcast %3 : vector<1x128xf32> to vector<2x128xf32>
    %5 = arith.addf %2, %4 : vector<2x128xf32>
    %6 = arith.truncf %5 : vector<2x128xf32> to vector<2x128xbf16>
    %c0_5 = arith.constant 0 : index
    %c0_6 = arith.constant 0 : index
    %7 = vector.load %arg4[%c0_5, %c0_6] : memref<128x128xbf16, #tpu.memory_space<vmem>>, vector<128x128xbf16>
    %cst_7 = arith.constant dense<0.000000e+00> : vector<2x128xf32>
    %8 = tpu.matmul %6, %7, %cst_7 {dimension_numbers = #tpu.dot_dimension_numbers<[1], [0], [0], [1], [0, 0, 1, 1], [], []>} : vector<2x128xbf16>, vector<128x128xbf16>, vector<2x128xf32> -> vector<2x128xf32>
    %c0_8 = arith.constant 0 : index
    %c0_9 = arith.constant 0 : index
    %9 = vector.load %arg5[%c0_8, %c0_9] : memref<1x128xf32, #tpu.memory_space<vmem>>, vector<1x128xf32>
    %10 = vector.broadcast %9 : vector<1x128xf32> to vector<2x128xf32>
    %11 = arith.addf %8, %10 : vector<2x128xf32>
    %12 = arith.truncf %11 : vector<2x128xf32> to vector<2x128xbf16>
    %c0_10 = arith.constant 0 : index
    %c0_11 = arith.constant 0 : index
    %13 = vector.load %arg6[%c0_10, %c0_11] : memref<128x128xbf16, #tpu.memory_space<vmem>>, vector<128x128xbf16>
    %cst_12 = arith.constant dense<0.000000e+00> : vector<2x128xf32>
    %14 = tpu.matmul %12, %13, %cst_12 {dimension_numbers = #tpu.dot_dimension_numbers<[1], [0], [0], [1], [0, 0, 1, 1], [], []>} : vector<2x128xbf16>, vector<128x128xbf16>, vector<2x128xf32> -> vector<2x128xf32>
    %c0_13 = arith.constant 0 : index
    %c0_14 = arith.constant 0 : index
    %15 = vector.load %arg7[%c0_13, %c0_14] : memref<1x128xf32, #tpu.memory_space<vmem>>, vector<1x128xf32>
    %16 = vector.broadcast %15 : vector<1x128xf32> to vector<2x128xf32>
    %17 = arith.addf %14, %16 : vector<2x128xf32>
    %c0_15 = arith.constant 0 : index
    %c0_16 = arith.constant 0 : index
    %18 = vector.load %arg8[%c0_15, %c0_16] : memref<2x128xf32, #tpu.memory_space<vmem>>, vector<2x128xf32>
    tpu.vector_store %arg8[%c0_15, %c0_16], %17 {strides = array<i32>} : memref<2x128xf32, #tpu.memory_space<vmem>>, vector<2x128xf32>,
    return
  }
  func.func @transform_0(%arg0: i32) -> (i32, i32) {
    %c0_i32 = arith.constant 0 : i32
    %c0_i32_0 = arith.constant 0 : i32
    %c0_i32_1 = arith.constant 0 : i32
    return %c0_i32, %c0_i32_0 : i32, i32
  }
  func.func @transform_1(%arg0: i32) -> (i32, i32) {
    %c0_i32 = arith.constant 0 : i32
    %c0_i32_0 = arith.constant 0 : i32
    %c0_i32_1 = arith.constant 0 : i32
    return %c0_i32, %c0_i32_0 : i32, i32
  }
  func.func @transform_2(%arg0: i32) -> (i32, i32) {
    %c0_i32 = arith.constant 0 : i32
    %c0_i32_0 = arith.constant 0 : i32
    %c0_i32_1 = arith.constant 0 : i32
    return %c0_i32, %c0_i32_0 : i32, i32
  }
  func.func @transform_3(%arg0: i32) -> (i32, i32) {
    %c0_i32 = arith.constant 0 : i32
    %c0_i32_0 = arith.constant 0 : i32
    %c0_i32_1 = arith.constant 0 : i32
    return %c0_i32, %c0_i32_0 : i32, i32
  }
  func.func @transform_4(%arg0: i32) -> (i32, i32) {
    %c0_i32 = arith.constant 0 : i32
    %c0_i32_0 = arith.constant 0 : i32
    %c0_i32_1 = arith.constant 0 : i32
    return %c0_i32, %c0_i32_0 : i32, i32
  }
  func.func @transform_5(%arg0: i32) -> (i32, i32) {
    %c0_i32 = arith.constant 0 : i32
    %c0_i32_0 = arith.constant 0 : i32
    %c0_i32_1 = arith.constant 0 : i32
    return %c0_i32, %c0_i32_0 : i32, i32
  }
  func.func @transform_6(%arg0: i32) -> (i32, i32) {
    %c0_i32 = arith.constant 0 : i32
    %c0_i32_0 = arith.constant 0 : i32
    %c0_i32_1 = arith.constant 0 : i32
    return %c0_i32, %c0_i32_0 : i32, i32
  }
  func.func @transform_7(%arg0: i32) -> (i32, i32) {
    %c0_i32 = arith.constant 0 : i32
    %c0_i32_0 = arith.constant 0 : i32
    %c0_i32_1 = arith.constant 0 : i32
    return %c0_i32, %c0_i32_0 : i32, i32
  }
}

</mosaic_0001>

<llo_original>
// kernel: lenet_forward.3
$region0: #{lenet_forward.3}
  #allocation0 [shape = 'u32[]', space=smem, size = 0x4, offset = 0x4, fixed_abs, tag = 'smem constant byte address 0x4 - core index']
  #allocation1 [shape = 'u32[144,128]{1,0:T(1,128)}', space=vmem, size = 0x12000, scoped, tag = 'internal scratch']
  %s0 = inlined_call_operand.vmem [shape: bf16[2,4,196,128], index: 0, kind: input, shape index: {}]
  %s1 = inlined_call_operand.vmem [shape: bf16[128,128], index: 1, kind: input, shape index: {}]
  %s2 = inlined_call_operand.vmem [shape: f32[1,128], index: 2, kind: input, shape index: {}]
  %s3 = inlined_call_operand.vmem [shape: bf16[2,196,128], index: 3, kind: output, shape index: {}]
  %s4 = sld [smem:[#allocation0]]
  $region45: #{lenet_forward.3} parent=0
    _
  %s6 = ssub.s32 1, %s4
  %s7 = scalar_select 0, %s6, %s4
  loop: start=0, step=1, limit=4
  $region2: #{lenet_forward.3} parent=0 // loop_pre_header
    _
  $region3: #{lenet_forward.3} parent=0 // loop_header
    %s9 = sphi 0, %s13
    %p10 = scmp.ge.s32.totalorder %s9, 4
    %s19 = sphi 0, %s21
    %s22 = sphi 0, %s19
    %s23 = sphi 0, %s22
    %s39 = sphi 0, %s23
    %s43 = sphi 0, %s43
    %s45 = sphi 0, %s43
    %s46 = sphi 0, %s45
    %s60 = sphi 0, %s46
    %s64 = sphi 0, %s64
    %s66 = sphi 0, %s64
    %s67 = sphi 0, %s66
    %s81 = sphi 0, %s67
    %s87 = sphi 0, %s89
    %s90 = sphi 0, %s87
    %s91 = sphi 0, %s90
    %s107 = sphi 0, %s91
  $region4: #{lenet_forward.3} parent=0 // loop_header_branch
    %12 = sbr.rel (%p10) target = $region8
  $region5: #{lenet_forward.3} parent=0 // loop_body
    %s14 = ssub.s32 %s9, 1
    %s15 = ssub.s32 %s9, 2
    %s16 = sadd.s32 %s9, 1
    %s17 = ssub.s32 %s9, %s16
    %p18 = scmp.eq.s32.totalorder %s17, 0
    %s20 = sadd.s32 %s19, 1
    %s21 = scalar_select %p18, %s19, %s20
    %p24 = pneg %p18
    %p25 = scmp.eq.s32.totalorder %s9, 1
    %p26 = por %p24, %p25
    %p27 = scmp.ne.s32.totalorder %s19, %s22
    %p28 = scmp.eq.s32.totalorder %s9, 0
    %p29 = por %p27, %p28
    %p30 = scmp.ne.s32.totalorder %s19, %s22
    %p31 = scmp.eq.s32.totalorder %s14, 1
    %p32 = por %p30, %p31
    %p33 = scmp.ne.s32.totalorder %s22, %s23
    %p34 = scmp.eq.s32.totalorder %s14, 0
    %p35 = por %p33, %p34
    %p36 = scmp.ne.s32.totalorder %s22, %s23
    %p37 = scmp.eq.s32.totalorder %s15, 1
    %p38 = por %p36, %p37
    %p40 = scmp.ne.s32.totalorder %s23, %s39
    %p41 = scmp.eq.s32.totalorder %s15, 0
    %p42 = por %p40, %p41
    %s44 = sadd.s32 %s43, 1
    %p47 = scmp.eq.s32.totalorder %s9, 1
    %p48 = scmp.ne.s32.totalorder %s43, %s45
    %p49 = scmp.eq.s32.totalorder %s9, 0
    %p50 = por %p48, %p49
    %p51 = scmp.ne.s32.totalorder %s43, %s45
    %p52 = scmp.eq.s32.totalorder %s14, 1
    %p53 = por %p51, %p52
    %p54 = scmp.ne.s32.totalorder %s45, %s46
    %p55 = scmp.eq.s32.totalorder %s14, 0
    %p56 = por %p54, %p55
    %p57 = scmp.ne.s32.totalorder %s45, %s46
    %p58 = scmp.eq.s32.totalorder %s15, 1
    %p59 = por %p57, %p58
    %p61 = scmp.ne.s32.totalorder %s46, %s60
    %p62 = scmp.eq.s32.totalorder %s15, 0
    %p63 = por %p61, %p62
    %s65 = sadd.s32 %s64, 1
    %p68 = scmp.eq.s32.totalorder %s9, 1
    %p69 = scmp.ne.s32.totalorder %s64, %s66
    %p70 = scmp.eq.s32.totalorder %s9, 0
    %p71 = por %p69, %p70
    %p72 = scmp.ne.s32.totalorder %s64, %s66
    %p73 = scmp.eq.s32.totalorder %s14, 1
    %p74 = por %p72, %p73
    %p75 = scmp.ne.s32.totalorder %s66, %s67
    %p76 = scmp.eq.s32.totalorder %s14, 0
    %p77 = por %p75, %p76
    %p78 = scmp.ne.s32.totalorder %s66, %s67
    %p79 = scmp.eq.s32.totalorder %s15, 1
    %p80 = por %p78, %p79
    %p82 = scmp.ne.s32.totalorder %s67, %s81
    %p83 = scmp.eq.s32.totalorder %s15, 0
    %p84 = por %p82, %p83
    %s85 = ssub.s32 %s9, %s16
    %p86 = scmp.eq.s32.totalorder %s85, 0
    %s88 = sadd.s32 %s87, 1
    %s89 = scalar_select %p86, %s87, %s88
    %p92 = pneg %p86
    %p93 = scmp.eq.s32.totalorder %s9, 1
    %p94 = por %p92, %p93
    %p95 = scmp.ne.s32.totalorder %s87, %s90
    %p96 = scmp.eq.s32.totalorder %s9, 0
    %p97 = por %p95, %p96
    %p98 = scmp.ne.s32.totalorder %s87, %s90
    %p99 = scmp.eq.s32.totalorder %s14, 1
    %p100 = por %p98, %p99
    %p101 = scmp.ne.s32.totalorder %s90, %s91
    %p102 = scmp.eq.s32.totalorder %s14, 0
    %p103 = por %p101, %p102
    %p104 = scmp.ne.s32.totalorder %s90, %s91
    %p105 = scmp.eq.s32.totalorder %s15, 1
    %p106 = por %p104, %p105
    %p108 = scmp.ne.s32.totalorder %s91, %s107
    %p109 = scmp.eq.s32.totalorder %s15, 0
    %p110 = por %p108, %p109
    %p111 = scmp.le.s32.totalorder 1, %s9
    %p112 = scmp.lt.s32.totalorder %s9, 3
    %p113 = pnand %p111, %p112
    %p114 = pneg %p113
    // Predicated region
    $region9: #{lenet_forward.3} parent=5 // pred_check
      _
    $region10: #{lenet_forward.3} parent=5 // pred_check_branch
      %116 = sbr.rel (%p113) target = $region12
    $region11: #{lenet_forward.3} parent=5 // pred_region
      %s117 = ssub.s32 %s9, 1
      // Predicated region
      $region13: #{lenet_forward.3} parent=11 // pred_check
        %p118 = pneg %p56
      $region14: #{lenet_forward.3} parent=11 // pred_check_branch
        %120 = sbr.rel (%p118) target = $region16
      $region15: #{lenet_forward.3} parent=11 // pred_region
        _
      $region16: #{lenet_forward.3} parent=11 // pred_fallthru
        _
      // Predicated region
      $region17: #{lenet_forward.3} parent=11 // pred_check
        %p121 = pneg %p77
      $region18: #{lenet_forward.3} parent=11 // pred_check_branch
        %123 = sbr.rel (%p121) target = $region20
      $region19: #{lenet_forward.3} parent=11 // pred_region
        _
      $region20: #{lenet_forward.3} parent=11 // pred_fallthru
        _
    $region12: #{lenet_forward.3} parent=5 // pred_fallthru
      _
    %p124 = scmp.lt.s32.totalorder %s9, 2
    // Predicated region
    $region21: #{lenet_forward.3} parent=5 // pred_check
      %p125 = pneg %p124
    $region22: #{lenet_forward.3} parent=5 // pred_check_branch
      %127 = sbr.rel (%p125) target = $region24
    $region23: #{lenet_forward.3} parent=5 // pred_region
      // Predicated region
      $region25: #{lenet_forward.3} parent=23 // pred_check
        %p128 = pneg %p29
      $region26: #{lenet_forward.3} parent=23 // pred_check_branch
        %130 = sbr.rel (%p128) target = $region28
      $region27: #{lenet_forward.3} parent=23 // pred_region
        %p131 = scmp.lt.s32.totalorder %s9, 1
        %s132 = scalar_select %p131, %s9, 1
        %s133 = smul.addr %s132, 100
        %s134 = smul.addr %s133, 4
        %s135 = scalar_lea.vmem %s0, %s134
      $region28: #{lenet_forward.3} parent=23 // pred_fallthru
        _
    $region24: #{lenet_forward.3} parent=5 // pred_fallthru
      _
    %p136 = scmp.le.s32.totalorder 1, %s9
    %p137 = scmp.lt.s32.totalorder %s9, 3
    %p138 = pnand %p136, %p137
    %p139 = pneg %p138
    // Predicated region
    $region29: #{lenet_forward.3} parent=5 // pred_check
      _
    $region30: #{lenet_forward.3} parent=5 // pred_check_branch
      %141 = sbr.rel (%p138) target = $region32
    $region31: #{lenet_forward.3} parent=5 // pred_region
      %s142 = ssub.s32 %s9, 1
      %p143 = scmp.lt.s32.totalorder %s14, 1
      %s144 = scalar_select %p143, %s14, 1
      %s145 = smul.addr %s144, 100
      %s146 = smul.addr %s145, 4
      %s147 = scalar_lea.vmem %s0, %s146
      %p148 = pneg %p35
      %p149 = pneg %p32
      %p150 = pneg %p56
      %p151 = pneg %p53
      %p152 = pneg %p77
      %p153 = pneg %p74
      %p154 = pneg %p103
      %p155 = pneg %p100
      %p156 = scmp.lt.s32.totalorder %s14, 1
      %s157 = scalar_select %p156, %s14, 1
      %s158 = smul.addr %s157, 25
      %s159 = smul.addr %s158, 4
      %s160 = scalar_lea.vmem %s3, %s159
      %p161 = scmp.lt.s32.totalorder %s14, 1
      %s162 = scalar_select %p161, %s14, 1
      %s163 = smul.addr %s162, 100
      %s164 = smul.addr %s163, 4
      %s165 = scalar_lea.vmem %s0, %s164
      %p166 = scmp.lt.s32.totalorder %s14, 1
      %s167 = scalar_select %p166, %s14, 1
      %s168 = smul.addr %s167, 25
      %s169 = smul.addr %s168, 4
      %s170 = scalar_lea.vmem %s3, %s169
      %v172 = vld [vmem:[%s165] sm:$0xf]
      %v173 = vld [vmem:[%s165 + $0x4] sm:$0xf]
      %v174 = vld [vmem:[%s165 + $0x8] sm:$0xf]
      %v175 = vld [vmem:[%s165 + $0xc] sm:$0xf]
      %v176 = vld [vmem:[%s165 + $0x10] sm:$0xf]
      %v177 = vld [vmem:[%s165 + $0x14] sm:$0xf]
      %v178 = vld [vmem:[%s165 + $0x18] sm:$0xf]
      %v179 = vld [vmem:[%s165 + $0x1c] sm:$0xf]
      %v180 = vld [vmem:[%s165 + $0x20] sm:$0xf]
      %v181 = vld [vmem:[%s165 + $0x24] sm:$0xf]
      %v182 = vld [vmem:[%s165 + $0x28] sm:$0xf]
      %v183 = vld [vmem:[%s165 + $0x2c] sm:$0xf]
      %v184 = vld [vmem:[%s165 + $0x30] sm:$0xf]
      %v185 = vld [vmem:[%s165 + $0x34] sm:$0xf]
      %v186 = vld [vmem:[%s165 + $0x38] sm:$0xf]
      %v187 = vld [vmem:[%s165 + $0x3c] sm:$0xf]
      %v188 = vld [vmem:[%s165 + $0x40] sm:$0xf]
      %v189 = vld [vmem:[%s165 + $0x44] sm:$0xf]
      %v190 = vld [vmem:[%s165 + $0x48] sm:$0xf]
      %v191 = vld [vmem:[%s165 + $0x4c] sm:$0xf]
      %v192 = vld [vmem:[%s165 + $0x50] sm:$0xf]
      %v193 = vld [vmem:[%s165 + $0x54] sm:$0xf]
      %v194 = vld [vmem:[%s165 + $0x58] sm:$0xf]
      %v195 = vld [vmem:[%s165 + $0x5c] sm:$0xf]
      %v196 = vld [vmem:[%s165 + $0x60] sm:$0x3]
      %v197 = vld [vmem:[%s1] sm:$0xf]
      %v198 = vld [vmem:[%s1 + $0x4] sm:$0xf]
      %v199 = vld [vmem:[%s1 + $0x8] sm:$0xf]
      %v200 = vld [vmem:[%s1 + $0xc] sm:$0xf]
      %v201 = vld [vmem:[%s1 + $0x10] sm:$0xf]
      %v202 = vld [vmem:[%s1 + $0x14] sm:$0xf]
      %v203 = vld [vmem:[%s1 + $0x18] sm:$0xf]
      %v204 = vld [vmem:[%s1 + $0x1c] sm:$0xf]
      %v205 = vld [vmem:[%s1 + $0x20] sm:$0xf]
      %v206 = vld [vmem:[%s1 + $0x24] sm:$0xf]
      %v207 = vld [vmem:[%s1 + $0x28] sm:$0xf]
      %v208 = vld [vmem:[%s1 + $0x2c] sm:$0xf]
      %v209 = vld [vmem:[%s1 + $0x30] sm:$0xf]
      %v210 = vld [vmem:[%s1 + $0x34] sm:$0xf]
      %v211 = vld [vmem:[%s1 + $0x38] sm:$0xf]
      %v212 = vld [vmem:[%s1 + $0x3c] sm:$0xf]
      %v213 = vld [vmem:[%s2] sm:$0x1]
      %v215 = vlaneseq
      %v216 = vshrl.u32 %v215, 7
      %v217 = vsub.s32 0, %v216
      %v218 = vrot.slane %v213, %v217
      %v245 = vunpack.c.l.b16 %v172
      %v246 = vunpack.c.l.b16 %v173
      %v247 = vunpack.c.l.b16 %v174
      %v248 = vunpack.c.l.b16 %v175
      %v249 = vunpack.c.l.b16 %v176
      %v250 = vunpack.c.l.b16 %v177
      %v251 = vunpack.c.l.b16 %v178
      %v252 = vunpack.c.l.b16 %v179
      %v253 = vunpack.c.l.b16 %v180
      %v254 = vunpack.c.l.b16 %v181
      %v255 = vunpack.c.l.b16 %v182
      %v256 = vunpack.c.l.b16 %v183
      %v257 = vunpack.c.l.b16 %v184
      %v258 = vunpack.c.l.b16 %v185
      %v259 = vunpack.c.l.b16 %v186
      %v260 = vunpack.c.l.b16 %v187
      %v261 = vunpack.c.l.b16 %v188
      %v262 = vunpack.c.l.b16 %v189
      %v263 = vunpack.c.l.b16 %v190
      %v264 = vunpack.c.l.b16 %v191
      %v265 = vunpack.c.l.b16 %v192
      %v266 = vunpack.c.l.b16 %v193
      %v267 = vunpack.c.l.b16 %v194
      %v268 = vunpack.c.l.b16 %v195
      %v269 = vunpack.c.l.b16 %v196
      %v270 = vpack.c.b16 %v246, %v245
      %v271 = vpack.c.b16 %v248, %v247
      %v272 = vpack.c.b16 %v250, %v249
      %v273 = vpack.c.b16 %v252, %v251
      %v274 = vpack.c.b16 %v254, %v253
      %v275 = vpack.c.b16 %v256, %v255
      %v276 = vpack.c.b16 %v258, %v257
      %v277 = vpack.c.b16 %v260, %v259
      %v278 = vpack.c.b16 %v262, %v261
      %v279 = vpack.c.b16 %v264, %v263
      %v280 = vpack.c.b16 %v266, %v265
      %v281 = vpack.c.b16 %v268, %v267
      %v282 = vpack.c.b16 %v269, %v269
      %v312 = vunpack.c.l.b16 %v197
      %v313 = vunpack.c.l.b16 %v198
      %v314 = vunpack.c.l.b16 %v199
      %v315 = vunpack.c.l.b16 %v200
      %v316 = vunpack.c.l.b16 %v201
      %v317 = vunpack.c.l.b16 %v202
      %v318 = vunpack.c.l.b16 %v203
      %v319 = vunpack.c.l.b16 %v204
      %v320 = vunpack.c.l.b16 %v205
      %v321 = vunpack.c.l.b16 %v206
      %v322 = vunpack.c.l.b16 %v207
      %v323 = vunpack.c.l.b16 %v208
      %v324 = vunpack.c.l.b16 %v209
      %v325 = vunpack.c.l.b16 %v210
      %v326 = vunpack.c.l.b16 %v211
      %v327 = vunpack.c.l.b16 %v212
      %v328 = vpack.c.b16 %v313, %v312
      %v329 = vpack.c.b16 %v315, %v314
      %v330 = vpack.c.b16 %v317, %v316
      %v331 = vpack.c.b16 %v319, %v318
      %v332 = vpack.c.b16 %v321, %v320
      %v333 = vpack.c.b16 %v323, %v322
      %v334 = vpack.c.b16 %v325, %v324
      %v335 = vpack.c.b16 %v327, %v326
      %344 = vmatprep.subr.bf16.mxu0 0
      %345 = vmatpush1.bf16.msra.mxu0 %v335
      %346 = vmatprep.subr.bf16.mxu0 0
      %347 = vmatpush1.bf16.msra.mxu0 %v334
      %348 = vmatprep.subr.bf16.mxu0 0
      %349 = vmatpush1.bf16.msra.mxu0 %v333
      %350 = vmatprep.subr.bf16.mxu0 0
      %351 = vmatpush1.bf16.msra.mxu0 %v332
      %352 = vmatprep.subr.bf16.mxu0 0
      %353 = vmatpush1.bf16.msra.mxu0 %v331
      %354 = vmatprep.subr.bf16.mxu0 0
      %355 = vmatpush1.bf16.msra.mxu0 %v330
      %356 = vmatprep.subr.bf16.mxu0 0
      %357 = vmatpush1.bf16.msra.mxu0 %v329
      %358 = vmatprep.subr.bf16.mxu0 0
      %359 = vmatpush1.bf16.msra.mxu0 %v328
      %360 = vmatprep.subr.bf16.mxu0 0
      %361 = vmatpush2.bf16.msra.mxu0 0
      %362 = vmatprep.subr.bf16.mxu0 0
      %363 = vmatpush2.bf16.msra.mxu0 0
      %364 = vmatprep.subr.bf16.mxu0 0
      %365 = vmatpush2.bf16.msra.mxu0 0
      %366 = vmatprep.subr.bf16.mxu0 0
      %367 = vmatpush2.bf16.msra.mxu0 0
      %368 = vmatprep.subr.bf16.mxu0 0
      %369 = vmatpush2.bf16.msra.mxu0 0
      %370 = vmatprep.subr.bf16.mxu0 0
      %371 = vmatpush2.bf16.msra.mxu0 0
      %372 = vmatprep.subr.bf16.mxu0 0
      %373 = vmatpush2.bf16.msra.mxu0 0
      %374 = vmatprep.subr.bf16.mxu0 0
      %375 = vmatpush2.bf16.msra.mxu0 0
      %376 = vmatprep.mubr.bf16.mxu0 0
      %377 = vmatmul.mubr.bf16.gmra.mxu0 %v270
      %v378 = vpop.f32.mrf.mxu0
      %v379 = vadd.f32 %v218, %v378
      %v380 = vpop.f32.mrf.mxu0
      %v381 = vpop.f32.mrf.mxu0
      %v382 = vadd.f32 %v218, %v381
      %v383 = vpop.f32.mrf.mxu0
      %384 = vmatprep.mubr.bf16.mxu0 0
      %385 = vmatmul.mubr.bf16.gmra.mxu0 %v271
      %v386 = vpop.f32.mrf.mxu0
      %v387 = vadd.f32 %v218, %v386
      %v388 = vpop.f32.mrf.mxu0
      %v389 = vpop.f32.mrf.mxu0
      %v390 = vadd.f32 %v218, %v389
      %v391 = vpop.f32.mrf.mxu0
      %392 = vmatprep.mubr.bf16.mxu0 0
      %393 = vmatmul.mubr.bf16.gmra.mxu0 %v272
      %v394 = vpop.f32.mrf.mxu0
      %v395 = vadd.f32 %v218, %v394
      %v396 = vpop.f32.mrf.mxu0
      %v397 = vpop.f32.mrf.mxu0
      %v398 = vadd.f32 %v218, %v397
      %v399 = vpop.f32.mrf.mxu0
      %400 = vmatprep.mubr.bf16.mxu0 0
      %401 = vmatmul.mubr.bf16.gmra.mxu0 %v273
      %v402 = vpop.f32.mrf.mxu0
      %v403 = vadd.f32 %v218, %v402
      %v404 = vpop.f32.mrf.mxu0
      %v405 = vpop.f32.mrf.mxu0
      %v406 = vadd.f32 %v218, %v405
      %v407 = vpop.f32.mrf.mxu0
      %408 = vmatprep.mubr.bf16.mxu0 0
      %409 = vmatmul.mubr.bf16.gmra.mxu0 %v274
      %v410 = vpop.f32.mrf.mxu0
      %v411 = vadd.f32 %v218, %v410
      %v412 = vpop.f32.mrf.mxu0
      %v413 = vpop.f32.mrf.mxu0
      %v414 = vadd.f32 %v218, %v413
      %v415 = vpop.f32.mrf.mxu0
      %416 = vmatprep.mubr.bf16.mxu0 0
      %417 = vmatmul.mubr.bf16.gmra.mxu0 %v275
      %v418 = vpop.f32.mrf.mxu0
      %v419 = vadd.f32 %v218, %v418
      %v420 = vpop.f32.mrf.mxu0
      %v421 = vpop.f32.mrf.mxu0
      %v422 = vadd.f32 %v218, %v421
      %v423 = vpop.f32.mrf.mxu0
      %424 = vmatprep.mubr.bf16.mxu0 0
      %425 = vmatmul.mubr.bf16.gmra.mxu0 %v276
      %v426 = vpop.f32.mrf.mxu0
      %v427 = vadd.f32 %v218, %v426
      %v428 = vpop.f32.mrf.mxu0
      %v429 = vpop.f32.mrf.mxu0
      %v430 = vadd.f32 %v218, %v429
      %v431 = vpop.f32.mrf.mxu0
      %432 = vmatprep.mubr.bf16.mxu0 0
      %433 = vmatmul.mubr.bf16.gmra.mxu0 %v277
      %v434 = vpop.f32.mrf.mxu0
      %v435 = vadd.f32 %v218, %v434
      %v436 = vpop.f32.mrf.mxu0
      %v437 = vpop.f32.mrf.mxu0
      %v438 = vadd.f32 %v218, %v437
      %v439 = vpop.f32.mrf.mxu0
      %440 = vmatprep.mubr.bf16.mxu0 0
      %441 = vmatmul.mubr.bf16.gmra.mxu0 %v278
      %v442 = vpop.f32.mrf.mxu0
      %v443 = vadd.f32 %v218, %v442
      %v444 = vpop.f32.mrf.mxu0
      %v445 = vpop.f32.mrf.mxu0
      %v446 = vadd.f32 %v218, %v445
      %v447 = vpop.f32.mrf.mxu0
      %448 = vmatprep.mubr.bf16.mxu0 0
      %449 = vmatmul.mubr.bf16.gmra.mxu0 %v279
      %v450 = vpop.f32.mrf.mxu0
      %v451 = vadd.f32 %v218, %v450
      %v452 = vpop.f32.mrf.mxu0
      %v453 = vpop.f32.mrf.mxu0
      %v454 = vadd.f32 %v218, %v453
      %v455 = vpop.f32.mrf.mxu0
      %456 = vmatprep.mubr.bf16.mxu0 0
      %457 = vmatmul.mubr.bf16.gmra.mxu0 %v280
      %v458 = vpop.f32.mrf.mxu0
      %v459 = vadd.f32 %v218, %v458
      %v460 = vpop.f32.mrf.mxu0
      %v461 = vpop.f32.mrf.mxu0
      %v462 = vadd.f32 %v218, %v461
      %v463 = vpop.f32.mrf.mxu0
      %464 = vmatprep.mubr.bf16.mxu0 0
      %465 = vmatmul.mubr.bf16.gmra.mxu0 %v281
      %v466 = vpop.f32.mrf.mxu0
      %v467 = vadd.f32 %v218, %v466
      %v468 = vpop.f32.mrf.mxu0
      %v469 = vpop.f32.mrf.mxu0
      %v470 = vadd.f32 %v218, %v469
      %v471 = vpop.f32.mrf.mxu0
      %472 = vmatprep.mubr.bf16.mxu0 0
      %473 = vmatmul.mubr.bf16.gmra.mxu0 %v282
      %v474 = vpop.f32.mrf.mxu0
      %v475 = vadd.f32 %v218, %v474
      %v476 = vpop.f32.mrf.mxu0
      %v477 = vpop.f32.mrf.mxu0
      %v478 = vpop.f32.mrf.mxu0
      %479 = vdwg.mxu0
      %v480 = vmax.f32 %v379, 0.0
      %v481 = vmax.f32 %v382, 0.0
      %v482 = vmax.f32 %v387, 0.0
      %v483 = vmax.f32 %v390, 0.0
      %v484 = vmax.f32 %v395, 0.0
      %v485 = vmax.f32 %v398, 0.0
      %v486 = vmax.f32 %v403, 0.0
      %v487 = vmax.f32 %v406, 0.0
      %v488 = vmax.f32 %v411, 0.0
      %v489 = vmax.f32 %v414, 0.0
      %v490 = vmax.f32 %v419, 0.0
      %v491 = vmax.f32 %v422, 0.0
      %v492 = vmax.f32 %v427, 0.0
      %v493 = vmax.f32 %v430, 0.0
      %v494 = vmax.f32 %v435, 0.0
      %v495 = vmax.f32 %v438, 0.0
      %v496 = vmax.f32 %v443, 0.0
      %v497 = vmax.f32 %v446, 0.0
      %v498 = vmax.f32 %v451, 0.0
      %v499 = vmax.f32 %v454, 0.0
      %v500 = vmax.f32 %v459, 0.0
      %v501 = vmax.f32 %v462, 0.0
      %v502 = vmax.f32 %v467, 0.0
      %v503 = vmax.f32 %v470, 0.0
      %v504 = vmax.f32 %v475, 0.0
      %s505 = scalar_lea.vmem %s165, 100
      %v506 = vld [vmem:[%s505] sm:$0xf]
      %v507 = vld [vmem:[%s505 + $0x4] sm:$0xf]
      %v508 = vld [vmem:[%s505 + $0x8] sm:$0xf]
      %v509 = vld [vmem:[%s505 + $0xc] sm:$0xf]
      %v510 = vld [vmem:[%s505 + $0x10] sm:$0xf]
      %v511 = vld [vmem:[%s505 + $0x14] sm:$0xf]
      %v512 = vld [vmem:[%s505 + $0x18] sm:$0xf]
      %v513 = vld [vmem:[%s505 + $0x1c] sm:$0xf]
      %v514 = vld [vmem:[%s505 + $0x20] sm:$0xf]
      %v515 = vld [vmem:[%s505 + $0x24] sm:$0xf]
      %v516 = vld [vmem:[%s505 + $0x28] sm:$0xf]
      %v517 = vld [vmem:[%s505 + $0x2c] sm:$0xf]
      %v518 = vld [vmem:[%s505 + $0x30] sm:$0xf]
      %v519 = vld [vmem:[%s505 + $0x34] sm:$0xf]
      %v520 = vld [vmem:[%s505 + $0x38] sm:$0xf]
      %v521 = vld [vmem:[%s505 + $0x3c] sm:$0xf]
      %v522 = vld [vmem:[%s505 + $0x40] sm:$0xf]
      %v523 = vld [vmem:[%s505 + $0x44] sm:$0xf]
      %v524 = vld [vmem:[%s505 + $0x48] sm:$0xf]
      %v525 = vld [vmem:[%s505 + $0x4c] sm:$0xf]
      %v526 = vld [vmem:[%s505 + $0x50] sm:$0xf]
      %v527 = vld [vmem:[%s505 + $0x54] sm:$0xf]
      %v528 = vld [vmem:[%s505 + $0x58] sm:$0xf]
      %v529 = vld [vmem:[%s505 + $0x5c] sm:$0xf]
      %v530 = vld [vmem:[%s505 + $0x60] sm:$0x3]
      %v556 = vunpack.c.l.b16 %v506
      %v557 = vunpack.c.l.b16 %v507
      %v558 = vunpack.c.l.b16 %v508
      %v559 = vunpack.c.l.b16 %v509
      %v560 = vunpack.c.l.b16 %v510
      %v561 = vunpack.c.l.b16 %v511
      %v562 = vunpack.c.l.b16 %v512
      %v563 = vunpack.c.l.b16 %v513
      %v564 = vunpack.c.l.b16 %v514
      %v565 = vunpack.c.l.b16 %v515
      %v566 = vunpack.c.l.b16 %v516
      %v567 = vunpack.c.l.b16 %v517
      %v568 = vunpack.c.l.b16 %v518
      %v569 = vunpack.c.l.b16 %v519
      %v570 = vunpack.c.l.b16 %v520
      %v571 = vunpack.c.l.b16 %v521
      %v572 = vunpack.c.l.b16 %v522
      %v573 = vunpack.c.l.b16 %v523
      %v574 = vunpack.c.l.b16 %v524
      %v575 = vunpack.c.l.b16 %v525
      %v576 = vunpack.c.l.b16 %v526
      %v577 = vunpack.c.l.b16 %v527
      %v578 = vunpack.c.l.b16 %v528
      %v579 = vunpack.c.l.b16 %v529
      %v580 = vunpack.c.l.b16 %v530
      %v581 = vpack.c.b16 %v557, %v556
      %v582 = vpack.c.b16 %v559, %v558
      %v583 = vpack.c.b16 %v561, %v560
      %v584 = vpack.c.b16 %v563, %v562
      %v585 = vpack.c.b16 %v565, %v564
      %v586 = vpack.c.b16 %v567, %v566
      %v587 = vpack.c.b16 %v569, %v568
      %v588 = vpack.c.b16 %v571, %v570
      %v589 = vpack.c.b16 %v573, %v572
      %v590 = vpack.c.b16 %v575, %v574
      %v591 = vpack.c.b16 %v577, %v576
      %v592 = vpack.c.b16 %v579, %v578
      %v593 = vpack.c.b16 %v580, %v580
      %607 = vmatprep.subr.bf16.mxu0 0
      %608 = vmatpush1.bf16.msra.mxu0 %v335
      %609 = vmatprep.subr.bf16.mxu0 0
      %610 = vmatpush1.bf16.msra.mxu0 %v334
      %611 = vmatprep.subr.bf16.mxu0 0
      %612 = vmatpush1.bf16.msra.mxu0 %v333
      %613 = vmatprep.subr.bf16.mxu0 0
      %614 = vmatpush1.bf16.msra.mxu0 %v332
      %615 = vmatprep.subr.bf16.mxu0 0
      %616 = vmatpush1.bf16.msra.mxu0 %v331
      %617 = vmatprep.subr.bf16.mxu0 0
      %618 = vmatpush1.bf16.msra.mxu0 %v330
      %619 = vmatprep.subr.bf16.mxu0 0
      %620 = vmatpush1.bf16.msra.mxu0 %v329
      %621 = vmatprep.subr.bf16.mxu0 0
      %622 = vmatpush1.bf16.msra.mxu0 %v328
      %623 = vmatprep.subr.bf16.mxu0 0
      %624 = vmatpush2.bf16.msra.mxu0 0
      %625 = vmatprep.subr.bf16.mxu0 0
      %626 = vmatpush2.bf16.msra.mxu0 0
      %627 = vmatprep.subr.bf16.mxu0 0
      %628 = vmatpush2.bf16.msra.mxu0 0
      %629 = vmatprep.subr.bf16.mxu0 0
      %630 = vmatpush2.bf16.msra.mxu0 0
      %631 = vmatprep.subr.bf16.mxu0 0
      %632 = vmatpush2.bf16.msra.mxu0 0
      %633 = vmatprep.subr.bf16.mxu0 0
      %634 = vmatpush2.bf16.msra.mxu0 0
      %635 = vmatprep.subr.bf16.mxu0 0
      %636 = vmatpush2.bf16.msra.mxu0 0
      %637 = vmatprep.subr.bf16.mxu0 0
      %638 = vmatpush2.bf16.msra.mxu0 0
      %639 = vmatprep.mubr.bf16.mxu0 0
      %640 = vmatmul.mubr.bf16.gmra.mxu0 %v581
      %v641 = vpop.f32.mrf.mxu0
      %v642 = vadd.f32 %v218, %v641
      %v643 = vpop.f32.mrf.mxu0
      %v644 = vpop.f32.mrf.mxu0
      %v645 = vadd.f32 %v218, %v644
      %v646 = vpop.f32.mrf.mxu0
      %647 = vmatprep.mubr.bf16.mxu0 0
      %648 = vmatmul.mubr.bf16.gmra.mxu0 %v582
      %v649 = vpop.f32.mrf.mxu0
      %v650 = vadd.f32 %v218, %v649
      %v651 = vpop.f32.mrf.mxu0
      %v652 = vpop.f32.mrf.mxu0
      %v653 = vadd.f32 %v218, %v652
      %v654 = vpop.f32.mrf.mxu0
      %655 = vmatprep.mubr.bf16.mxu0 0
      %656 = vmatmul.mubr.bf16.gmra.mxu0 %v583
      %v657 = vpop.f32.mrf.mxu0
      %v658 = vadd.f32 %v218, %v657
      %v659 = vpop.f32.mrf.mxu0
      %v660 = vpop.f32.mrf.mxu0
      %v661 = vadd.f32 %v218, %v660
      %v662 = vpop.f32.mrf.mxu0
      %663 = vmatprep.mubr.bf16.mxu0 0
      %664 = vmatmul.mubr.bf16.gmra.mxu0 %v584
      %v665 = vpop.f32.mrf.mxu0
      %v666 = vadd.f32 %v218, %v665
      %v667 = vpop.f32.mrf.mxu0
      %v668 = vpop.f32.mrf.mxu0
      %v669 = vadd.f32 %v218, %v668
      %v670 = vpop.f32.mrf.mxu0
      %671 = vmatprep.mubr.bf16.mxu0 0
      %672 = vmatmul.mubr.bf16.gmra.mxu0 %v585
      %v673 = vpop.f32.mrf.mxu0
      %v674 = vadd.f32 %v218, %v673
      %v675 = vpop.f32.mrf.mxu0
      %v676 = vpop.f32.mrf.mxu0
      %v677 = vadd.f32 %v218, %v676
      %v678 = vpop.f32.mrf.mxu0
      %679 = vmatprep.mubr.bf16.mxu0 0
      %680 = vmatmul.mubr.bf16.gmra.mxu0 %v586
      %v681 = vpop.f32.mrf.mxu0
      %v682 = vadd.f32 %v218, %v681
      %v683 = vpop.f32.mrf.mxu0
      %v684 = vpop.f32.mrf.mxu0
      %v685 = vadd.f32 %v218, %v684
      %v686 = vpop.f32.mrf.mxu0
      %687 = vmatprep.mubr.bf16.mxu0 0
      %688 = vmatmul.mubr.bf16.gmra.mxu0 %v587
      %v689 = vpop.f32.mrf.mxu0
      %v690 = vadd.f32 %v218, %v689
      %v691 = vpop.f32.mrf.mxu0
      %v692 = vpop.f32.mrf.mxu0
      %v693 = vadd.f32 %v218, %v692
      %v694 = vpop.f32.mrf.mxu0
      %695 = vmatprep.mubr.bf16.mxu0 0
      %696 = vmatmul.mubr.bf16.gmra.mxu0 %v588
      %v697 = vpop.f32.mrf.mxu0
      %v698 = vadd.f32 %v218, %v697
      %v699 = vpop.f32.mrf.mxu0
      %v700 = vpop.f32.mrf.mxu0
      %v701 = vadd.f32 %v218, %v700
      %v702 = vpop.f32.mrf.mxu0
      %703 = vmatprep.mubr.bf16.mxu0 0
      %704 = vmatmul.mubr.bf16.gmra.mxu0 %v589
      %v705 = vpop.f32.mrf.mxu0
      %v706 = vadd.f32 %v218, %v705
      %v707 = vpop.f32.mrf.mxu0
      %v708 = vpop.f32.mrf.mxu0
      %v709 = vadd.f32 %v218, %v708
      %v710 = vpop.f32.mrf.mxu0
      %711 = vmatprep.mubr.bf16.mxu0 0
      %712 = vmatmul.mubr.bf16.gmra.mxu0 %v590
      %v713 = vpop.f32.mrf.mxu0
      %v714 = vadd.f32 %v218, %v713
      %v715 = vpop.f32.mrf.mxu0
      %v716 = vpop.f32.mrf.mxu0
      %v717 = vadd.f32 %v218, %v716
      %v718 = vpop.f32.mrf.mxu0
      %719 = vmatprep.mubr.bf16.mxu0 0
      %720 = vmatmul.mubr.bf16.gmra.mxu0 %v591
      %v721 = vpop.f32.mrf.mxu0
      %v722 = vadd.f32 %v218, %v721
      %v723 = vpop.f32.mrf.mxu0
      %v724 = vpop.f32.mrf.mxu0
      %v725 = vadd.f32 %v218, %v724
      %v726 = vpop.f32.mrf.mxu0
      %727 = vmatprep.mubr.bf16.mxu0 0
      %728 = vmatmul.mubr.bf16.gmra.mxu0 %v592
      %v729 = vpop.f32.mrf.mxu0
      %v730 = vadd.f32 %v218, %v729
      %v731 = vpop.f32.mrf.mxu0
      %v732 = vpop.f32.mrf.mxu0
      %v733 = vadd.f32 %v218, %v732
      %v734 = vpop.f32.mrf.mxu0
      %735 = vmatprep.mubr.bf16.mxu0 0
      %736 = vmatmul.mubr.bf16.gmra.mxu0 %v593
      %v737 = vpop.f32.mrf.mxu0
      %v738 = vadd.f32 %v218, %v737
      %v739 = vpop.f32.mrf.mxu0
      %v740 = vpop.f32.mrf.mxu0
      %v741 = vpop.f32.mrf.mxu0
      %742 = vdwg.mxu0
      %v743 = vmax.f32 %v642, 0.0
      %v744 = vmax.f32 %v645, 0.0
      %v745 = vmax.f32 %v650, 0.0
      %v746 = vmax.f32 %v653, 0.0
      %v747 = vmax.f32 %v658, 0.0
      %v748 = vmax.f32 %v661, 0.0
      %v749 = vmax.f32 %v666, 0.0
      %v750 = vmax.f32 %v669, 0.0
      %v751 = vmax.f32 %v674, 0.0
      %v752 = vmax.f32 %v677, 0.0
      %v753 = vmax.f32 %v682, 0.0
      %v754 = vmax.f32 %v685, 0.0
      %v755 = vmax.f32 %v690, 0.0
      %v756 = vmax.f32 %v693, 0.0
      %v757 = vmax.f32 %v698, 0.0
      %v758 = vmax.f32 %v701, 0.0
      %v759 = vmax.f32 %v706, 0.0
      %v760 = vmax.f32 %v709, 0.0
      %v761 = vmax.f32 %v714, 0.0
      %v762 = vmax.f32 %v717, 0.0
      %v763 = vmax.f32 %v722, 0.0
      %v764 = vmax.f32 %v725, 0.0
      %v765 = vmax.f32 %v730, 0.0
      %v766 = vmax.f32 %v733, 0.0
      %v767 = vmax.f32 %v738, 0.0
      %v768 = vmax.f32 %v480, %v743
      %v769 = vmax.f32 %v481, %v744
      %v770 = vmax.f32 %v482, %v745
      %v771 = vmax.f32 %v483, %v746
      %v772 = vmax.f32 %v484, %v747
      %v773 = vmax.f32 %v485, %v748
      %v774 = vmax.f32 %v486, %v749
      %v775 = vmax.f32 %v487, %v750
      %v776 = vmax.f32 %v488, %v751
      %v777 = vmax.f32 %v489, %v752
      %v778 = vmax.f32 %v490, %v753
      %v779 = vmax.f32 %v491, %v754
      %v780 = vmax.f32 %v492, %v755
      %v781 = vmax.f32 %v493, %v756
      %v782 = vmax.f32 %v494, %v757
      %v783 = vmax.f32 %v495, %v758
      %v784 = vmax.f32 %v496, %v759
      %v785 = vmax.f32 %v497, %v760
      %v786 = vmax.f32 %v498, %v761
      %v787 = vmax.f32 %v499, %v762
      %v788 = vmax.f32 %v500, %v763
      %v789 = vmax.f32 %v501, %v764
      %v790 = vmax.f32 %v502, %v765
      %v791 = vmax.f32 %v503, %v766
      %v792 = vmax.f32 %v504, %v767
      %s793 = scalar_lea.vmem %s165, 200
      %v794 = vld [vmem:[%s793] sm:$0xf]
      %v795 = vld [vmem:[%s793 + $0x4] sm:$0xf]
      %v796 = vld [vmem:[%s793 + $0x8] sm:$0xf]
      %v797 = vld [vmem:[%s793 + $0xc] sm:$0xf]
      %v798 = vld [vmem:[%s793 + $0x10] sm:$0xf]
      %v799 = vld [vmem:[%s793 + $0x14] sm:$0xf]
      %v800 = vld [vmem:[%s793 + $0x18] sm:$0xf]
      %v801 = vld [vmem:[%s793 + $0x1c] sm:$0xf]
      %v802 = vld [vmem:[%s793 + $0x20] sm:$0xf]
      %v803 = vld [vmem:[%s793 + $0x24] sm:$0xf]
      %v804 = vld [vmem:[%s793 + $0x28] sm:$0xf]
      %v805 = vld [vmem:[%s793 + $0x2c] sm:$0xf]
      %v806 = vld [vmem:[%s793 + $0x30] sm:$0xf]
      %v807 = vld [vmem:[%s793 + $0x34] sm:$0xf]
      %v808 = vld [vmem:[%s793 + $0x38] sm:$0xf]
      %v809 = vld [vmem:[%s793 + $0x3c] sm:$0xf]
      %v810 = vld [vmem:[%s793 + $0x40] sm:$0xf]
      %v811 = vld [vmem:[%s793 + $0x44] sm:$0xf]
      %v812 = vld [vmem:[%s793 + $0x48] sm:$0xf]
      %v813 = vld [vmem:[%s793 + $0x4c] sm:$0xf]
      %v814 = vld [vmem:[%s793 + $0x50] sm:$0xf]
      %v815 = vld [vmem:[%s793 + $0x54] sm:$0xf]
      %v816 = vld [vmem:[%s793 + $0x58] sm:$0xf]
      %v817 = vld [vmem:[%s793 + $0x5c] sm:$0xf]
      %v818 = vld [vmem:[%s793 + $0x60] sm:$0x3]
      %v844 = vunpack.c.l.b16 %v794
      %v845 = vunpack.c.l.b16 %v795
      %v846 = vunpack.c.l.b16 %v796
      %v847 = vunpack.c.l.b16 %v797
      %v848 = vunpack.c.l.b16 %v798
      %v849 = vunpack.c.l.b16 %v799
      %v850 = vunpack.c.l.b16 %v800
      %v851 = vunpack.c.l.b16 %v801
      %v852 = vunpack.c.l.b16 %v802
      %v853 = vunpack.c.l.b16 %v803
      %v854 = vunpack.c.l.b16 %v804
      %v855 = vunpack.c.l.b16 %v805
      %v856 = vunpack.c.l.b16 %v806
      %v857 = vunpack.c.l.b16 %v807
      %v858 = vunpack.c.l.b16 %v808
      %v859 = vunpack.c.l.b16 %v809
      %v860 = vunpack.c.l.b16 %v810
      %v861 = vunpack.c.l.b16 %v811
      %v862 = vunpack.c.l.b16 %v812
      %v863 = vunpack.c.l.b16 %v813
      %v864 = vunpack.c.l.b16 %v814
      %v865 = vunpack.c.l.b16 %v815
      %v866 = vunpack.c.l.b16 %v816
      %v867 = vunpack.c.l.b16 %v817
      %v868 = vunpack.c.l.b16 %v818
      %v869 = vpack.c.b16 %v845, %v844
      %v870 = vpack.c.b16 %v847, %v846
      %v871 = vpack.c.b16 %v849, %v848
      %v872 = vpack.c.b16 %v851, %v850
      %v873 = vpack.c.b16 %v853, %v852
      %v874 = vpack.c.b16 %v855, %v854
      %v875 = vpack.c.b16 %v857, %v856
      %v876 = vpack.c.b16 %v859, %v858
      %v877 = vpack.c.b16 %v861, %v860
      %v878 = vpack.c.b16 %v863, %v862
      %v879 = vpack.c.b16 %v865, %v864
      %v880 = vpack.c.b16 %v867, %v866
      %v881 = vpack.c.b16 %v868, %v868
      %895 = vmatprep.subr.bf16.mxu0 0
      %896 = vmatpush1.bf16.msra.mxu0 %v335
      %897 = vmatprep.subr.bf16.mxu0 0
      %898 = vmatpush1.bf16.msra.mxu0 %v334
      %899 = vmatprep.subr.bf16.mxu0 0
      %900 = vmatpush1.bf16.msra.mxu0 %v333
      %901 = vmatprep.subr.bf16.mxu0 0
      %902 = vmatpush1.bf16.msra.mxu0 %v332
      %903 = vmatprep.subr.bf16.mxu0 0
      %904 = vmatpush1.bf16.msra.mxu0 %v331
      %905 = vmatprep.subr.bf16.mxu0 0
      %906 = vmatpush1.bf16.msra.mxu0 %v330
      %907 = vmatprep.subr.bf16.mxu0 0
      %908 = vmatpush1.bf16.msra.mxu0 %v329
      %909 = vmatprep.subr.bf16.mxu0 0
      %910 = vmatpush1.bf16.msra.mxu0 %v328
      %911 = vmatprep.subr.bf16.mxu0 0
      %912 = vmatpush2.bf16.msra.mxu0 0
      %913 = vmatprep.subr.bf16.mxu0 0
      %914 = vmatpush2.bf16.msra.mxu0 0
      %915 = vmatprep.subr.bf16.mxu0 0
      %916 = vmatpush2.bf16.msra.mxu0 0
      %917 = vmatprep.subr.bf16.mxu0 0
      %918 = vmatpush2.bf16.msra.mxu0 0
      %919 = vmatprep.subr.bf16.mxu0 0
      %920 = vmatpush2.bf16.msra.mxu0 0
      %921 = vmatprep.subr.bf16.mxu0 0
      %922 = vmatpush2.bf16.msra.mxu0 0
      %923 = vmatprep.subr.bf16.mxu0 0
      %924 = vmatpush2.bf16.msra.mxu0 0
      %925 = vmatprep.subr.bf16.mxu0 0
      %926 = vmatpush2.bf16.msra.mxu0 0
      %927 = vmatprep.mubr.bf16.mxu0 0
      %928 = vmatmul.mubr.bf16.gmra.mxu0 %v869
      %v929 = vpop.f32.mrf.mxu0
      %v930 = vadd.f32 %v218, %v929
      %v931 = vpop.f32.mrf.mxu0
      %v932 = vpop.f32.mrf.mxu0
      %v933 = vadd.f32 %v218, %v932
      %v934 = vpop.f32.mrf.mxu0
      %935 = vmatprep.mubr.bf16.mxu0 0
      %936 = vmatmul.mubr.bf16.gmra.mxu0 %v870
      %v937 = vpop.f32.mrf.mxu0
      %v938 = vadd.f32 %v218, %v937
      %v939 = vpop.f32.mrf.mxu0
      %v940 = vpop.f32.mrf.mxu0
      %v941 = vadd.f32 %v218, %v940
      %v942 = vpop.f32.mrf.mxu0
      %943 = vmatprep.mubr.bf16.mxu0 0
      %944 = vmatmul.mubr.bf16.gmra.mxu0 %v871
      %v945 = vpop.f32.mrf.mxu0
      %v946 = vadd.f32 %v218, %v945
      %v947 = vpop.f32.mrf.mxu0
      %v948 = vpop.f32.mrf.mxu0
      %v949 = vadd.f32 %v218, %v948
      %v950 = vpop.f32.mrf.mxu0
      %951 = vmatprep.mubr.bf16.mxu0 0
      %952 = vmatmul.mubr.bf16.gmra.mxu0 %v872
      %v953 = vpop.f32.mrf.mxu0
      %v954 = vadd.f32 %v218, %v953
      %v955 = vpop.f32.mrf.mxu0
      %v956 = vpop.f32.mrf.mxu0
      %v957 = vadd.f32 %v218, %v956
      %v958 = vpop.f32.mrf.mxu0
      %959 = vmatprep.mubr.bf16.mxu0 0
      %960 = vmatmul.mubr.bf16.gmra.mxu0 %v873
      %v961 = vpop.f32.mrf.mxu0
      %v962 = vadd.f32 %v218, %v961
      %v963 = vpop.f32.mrf.mxu0
      %v964 = vpop.f32.mrf.mxu0
      %v965 = vadd.f32 %v218, %v964
      %v966 = vpop.f32.mrf.mxu0
      %967 = vmatprep.mubr.bf16.mxu0 0
      %968 = vmatmul.mubr.bf16.gmra.mxu0 %v874
      %v969 = vpop.f32.mrf.mxu0
      %v970 = vadd.f32 %v218, %v969
      %v971 = vpop.f32.mrf.mxu0
      %v972 = vpop.f32.mrf.mxu0
      %v973 = vadd.f32 %v218, %v972
      %v974 = vpop.f32.mrf.mxu0
      %975 = vmatprep.mubr.bf16.mxu0 0
      %976 = vmatmul.mubr.bf16.gmra.mxu0 %v875
      %v977 = vpop.f32.mrf.mxu0
      %v978 = vadd.f32 %v218, %v977
      %v979 = vpop.f32.mrf.mxu0
      %v980 = vpop.f32.mrf.mxu0
      %v981 = vadd.f32 %v218, %v980
      %v982 = vpop.f32.mrf.mxu0
      %983 = vmatprep.mubr.bf16.mxu0 0
      %984 = vmatmul.mubr.bf16.gmra.mxu0 %v876
      %v985 = vpop.f32.mrf.mxu0
      %v986 = vadd.f32 %v218, %v985
      %v987 = vpop.f32.mrf.mxu0
      %v988 = vpop.f32.mrf.mxu0
      %v989 = vadd.f32 %v218, %v988
      %v990 = vpop.f32.mrf.mxu0
      %991 = vmatprep.mubr.bf16.mxu0 0
      %992 = vmatmul.mubr.bf16.gmra.mxu0 %v877
      %v993 = vpop.f32.mrf.mxu0
      %v994 = vadd.f32 %v218, %v993
      %v995 = vpop.f32.mrf.mxu0
      %v996 = vpop.f32.mrf.mxu0
      %v997 = vadd.f32 %v218, %v996
      %v998 = vpop.f32.mrf.mxu0
      %999 = vmatprep.mubr.bf16.mxu0 0
      %1000 = vmatmul.mubr.bf16.gmra.mxu0 %v878
      %v1001 = vpop.f32.mrf.mxu0
      %v1002 = vadd.f32 %v218, %v1001
      %v1003 = vpop.f32.mrf.mxu0
      %v1004 = vpop.f32.mrf.mxu0
      %v1005 = vadd.f32 %v218, %v1004
      %v1006 = vpop.f32.mrf.mxu0
      %1007 = vmatprep.mubr.bf16.mxu0 0
      %1008 = vmatmul.mubr.bf16.gmra.mxu0 %v879
      %v1009 = vpop.f32.mrf.mxu0
      %v1010 = vadd.f32 %v218, %v1009
      %v1011 = vpop.f32.mrf.mxu0
      %v1012 = vpop.f32.mrf.mxu0
      %v1013 = vadd.f32 %v218, %v1012
      %v1014 = vpop.f32.mrf.mxu0
      %1015 = vmatprep.mubr.bf16.mxu0 0
      %1016 = vmatmul.mubr.bf16.gmra.mxu0 %v880
      %v1017 = vpop.f32.mrf.mxu0
      %v1018 = vadd.f32 %v218, %v1017
      %v1019 = vpop.f32.mrf.mxu0
      %v1020 = vpop.f32.mrf.mxu0
      %v1021 = vadd.f32 %v218, %v1020
      %v1022 = vpop.f32.mrf.mxu0
      %1023 = vmatprep.mubr.bf16.mxu0 0
      %1024 = vmatmul.mubr.bf16.gmra.mxu0 %v881
      %v1025 = vpop.f32.mrf.mxu0
      %v1026 = vadd.f32 %v218, %v1025
      %v1027 = vpop.f32.mrf.mxu0
      %v1028 = vpop.f32.mrf.mxu0
      %v1029 = vpop.f32.mrf.mxu0
      %1030 = vdwg.mxu0
      %v1031 = vmax.f32 %v930, 0.0
      %v1032 = vmax.f32 %v933, 0.0
      %v1033 = vmax.f32 %v938, 0.0
      %v1034 = vmax.f32 %v941, 0.0
      %v1035 = vmax.f32 %v946, 0.0
      %v1036 = vmax.f32 %v949, 0.0
      %v1037 = vmax.f32 %v954, 0.0
      %v1038 = vmax.f32 %v957, 0.0
      %v1039 = vmax.f32 %v962, 0.0
      %v1040 = vmax.f32 %v965, 0.0
      %v1041 = vmax.f32 %v970, 0.0
      %v1042 = vmax.f32 %v973, 0.0
      %v1043 = vmax.f32 %v978, 0.0
      %v1044 = vmax.f32 %v981, 0.0
      %v1045 = vmax.f32 %v986, 0.0
      %v1046 = vmax.f32 %v989, 0.0
      %v1047 = vmax.f32 %v994, 0.0
      %v1048 = vmax.f32 %v997, 0.0
      %v1049 = vmax.f32 %v1002, 0.0
      %v1050 = vmax.f32 %v1005, 0.0
      %v1051 = vmax.f32 %v1010, 0.0
      %v1052 = vmax.f32 %v1013, 0.0
      %v1053 = vmax.f32 %v1018, 0.0
      %v1054 = vmax.f32 %v1021, 0.0
      %v1055 = vmax.f32 %v1026, 0.0
      %s1056 = scalar_lea.vmem %s165, 300
      %v1057 = vld [vmem:[%s1056] sm:$0xf]
      %v1058 = vld [vmem:[%s1056 + $0x4] sm:$0xf]
      %v1059 = vld [vmem:[%s1056 + $0x8] sm:$0xf]
      %v1060 = vld [vmem:[%s1056 + $0xc] sm:$0xf]
      %v1061 = vld [vmem:[%s1056 + $0x10] sm:$0xf]
      %v1062 = vld [vmem:[%s1056 + $0x14] sm:$0xf]
      %v1063 = vld [vmem:[%s1056 + $0x18] sm:$0xf]
      %v1064 = vld [vmem:[%s1056 + $0x1c] sm:$0xf]
      %v1065 = vld [vmem:[%s1056 + $0x20] sm:$0xf]
      %v1066 = vld [vmem:[%s1056 + $0x24] sm:$0xf]
      %v1067 = vld [vmem:[%s1056 + $0x28] sm:$0xf]
      %v1068 = vld [vmem:[%s1056 + $0x2c] sm:$0xf]
      %v1069 = vld [vmem:[%s1056 + $0x30] sm:$0xf]
      %v1070 = vld [vmem:[%s1056 + $0x34] sm:$0xf]
      %v1071 = vld [vmem:[%s1056 + $0x38] sm:$0xf]
      %v1072 = vld [vmem:[%s1056 + $0x3c] sm:$0xf]
      %v1073 = vld [vmem:[%s1056 + $0x40] sm:$0xf]
      %v1074 = vld [vmem:[%s1056 + $0x44] sm:$0xf]
      %v1075 = vld [vmem:[%s1056 + $0x48] sm:$0xf]
      %v1076 = vld [vmem:[%s1056 + $0x4c] sm:$0xf]
      %v1077 = vld [vmem:[%s1056 + $0x50] sm:$0xf]
      %v1078 = vld [vmem:[%s1056 + $0x54] sm:$0xf]
      %v1079 = vld [vmem:[%s1056 + $0x58] sm:$0xf]
      %v1080 = vld [vmem:[%s1056 + $0x5c] sm:$0xf]
      %v1081 = vld [vmem:[%s1056 + $0x60] sm:$0x3]
      %v1107 = vunpack.c.l.b16 %v1057
      %v1108 = vunpack.c.l.b16 %v1058
      %v1109 = vunpack.c.l.b16 %v1059
      %v1110 = vunpack.c.l.b16 %v1060
      %v1111 = vunpack.c.l.b16 %v1061
      %v1112 = vunpack.c.l.b16 %v1062
      %v1113 = vunpack.c.l.b16 %v1063
      %v1114 = vunpack.c.l.b16 %v1064
      %v1115 = vunpack.c.l.b16 %v1065
      %v1116 = vunpack.c.l.b16 %v1066
      %v1117 = vunpack.c.l.b16 %v1067
      %v1118 = vunpack.c.l.b16 %v1068
      %v1119 = vunpack.c.l.b16 %v1069
      %v1120 = vunpack.c.l.b16 %v1070
      %v1121 = vunpack.c.l.b16 %v1071
      %v1122 = vunpack.c.l.b16 %v1072
      %v1123 = vunpack.c.l.b16 %v1073
      %v1124 = vunpack.c.l.b16 %v1074
      %v1125 = vunpack.c.l.b16 %v1075
      %v1126 = vunpack.c.l.b16 %v1076
      %v1127 = vunpack.c.l.b16 %v1077
      %v1128 = vunpack.c.l.b16 %v1078
      %v1129 = vunpack.c.l.b16 %v1079
      %v1130 = vunpack.c.l.b16 %v1080
      %v1131 = vunpack.c.l.b16 %v1081
      %v1132 = vpack.c.b16 %v1108, %v1107
      %v1133 = vpack.c.b16 %v1110, %v1109
      %v1134 = vpack.c.b16 %v1112, %v1111
      %v1135 = vpack.c.b16 %v1114, %v1113
      %v1136 = vpack.c.b16 %v1116, %v1115
      %v1137 = vpack.c.b16 %v1118, %v1117
      %v1138 = vpack.c.b16 %v1120, %v1119
      %v1139 = vpack.c.b16 %v1122, %v1121
      %v1140 = vpack.c.b16 %v1124, %v1123
      %v1141 = vpack.c.b16 %v1126, %v1125
      %v1142 = vpack.c.b16 %v1128, %v1127
      %v1143 = vpack.c.b16 %v1130, %v1129
      %v1144 = vpack.c.b16 %v1131, %v1131
      %1158 = vmatprep.subr.bf16.mxu0 0
      %1159 = vmatpush1.bf16.msra.mxu0 %v335
      %1160 = vmatprep.subr.bf16.mxu0 0
      %1161 = vmatpush1.bf16.msra.mxu0 %v334
      %1162 = vmatprep.subr.bf16.mxu0 0
      %1163 = vmatpush1.bf16.msra.mxu0 %v333
      %1164 = vmatprep.subr.bf16.mxu0 0
      %1165 = vmatpush1.bf16.msra.mxu0 %v332
      %1166 = vmatprep.subr.bf16.mxu0 0
      %1167 = vmatpush1.bf16.msra.mxu0 %v331
      %1168 = vmatprep.subr.bf16.mxu0 0
      %1169 = vmatpush1.bf16.msra.mxu0 %v330
      %1170 = vmatprep.subr.bf16.mxu0 0
      %1171 = vmatpush1.bf16.msra.mxu0 %v329
      %1172 = vmatprep.subr.bf16.mxu0 0
      %1173 = vmatpush1.bf16.msra.mxu0 %v328
      %1174 = vmatprep.subr.bf16.mxu0 0
      %1175 = vmatpush2.bf16.msra.mxu0 0
      %1176 = vmatprep.subr.bf16.mxu0 0
      %1177 = vmatpush2.bf16.msra.mxu0 0
      %1178 = vmatprep.subr.bf16.mxu0 0
      %1179 = vmatpush2.bf16.msra.mxu0 0
      %1180 = vmatprep.subr.bf16.mxu0 0
      %1181 = vmatpush2.bf16.msra.mxu0 0
      %1182 = vmatprep.subr.bf16.mxu0 0
      %1183 = vmatpush2.bf16.msra.mxu0 0
      %1184 = vmatprep.subr.bf16.mxu0 0
      %1185 = vmatpush2.bf16.msra.mxu0 0
      %1186 = vmatprep.subr.bf16.mxu0 0
      %1187 = vmatpush2.bf16.msra.mxu0 0
      %1188 = vmatprep.subr.bf16.mxu0 0
      %1189 = vmatpush2.bf16.msra.mxu0 0
      %1190 = vmatprep.mubr.bf16.mxu0 0
      %1191 = vmatmul.mubr.bf16.gmra.mxu0 %v1132
      %v1192 = vpop.f32.mrf.mxu0
      %v1193 = vadd.f32 %v218, %v1192
      %v1194 = vpop.f32.mrf.mxu0
      %v1195 = vpop.f32.mrf.mxu0
      %v1196 = vadd.f32 %v218, %v1195
      %v1197 = vpop.f32.mrf.mxu0
      %1198 = vmatprep.mubr.bf16.mxu0 0
      %1199 = vmatmul.mubr.bf16.gmra.mxu0 %v1133
      %v1200 = vpop.f32.mrf.mxu0
      %v1201 = vadd.f32 %v218, %v1200
      %v1202 = vpop.f32.mrf.mxu0
      %v1203 = vpop.f32.mrf.mxu0
      %v1204 = vadd.f32 %v218, %v1203
      %v1205 = vpop.f32.mrf.mxu0
      %1206 = vmatprep.mubr.bf16.mxu0 0
      %1207 = vmatmul.mubr.bf16.gmra.mxu0 %v1134
      %v1208 = vpop.f32.mrf.mxu0
      %v1209 = vadd.f32 %v218, %v1208
      %v1210 = vpop.f32.mrf.mxu0
      %v1211 = vpop.f32.mrf.mxu0
      %v1212 = vadd.f32 %v218, %v1211
      %v1213 = vpop.f32.mrf.mxu0
      %1214 = vmatprep.mubr.bf16.mxu0 0
      %1215 = vmatmul.mubr.bf16.gmra.mxu0 %v1135
      %v1216 = vpop.f32.mrf.mxu0
      %v1217 = vadd.f32 %v218, %v1216
      %v1218 = vpop.f32.mrf.mxu0
      %v1219 = vpop.f32.mrf.mxu0
      %v1220 = vadd.f32 %v218, %v1219
      %v1221 = vpop.f32.mrf.mxu0
      %1222 = vmatprep.mubr.bf16.mxu0 0
      %1223 = vmatmul.mubr.bf16.gmra.mxu0 %v1136
      %v1224 = vpop.f32.mrf.mxu0
      %v1225 = vadd.f32 %v218, %v1224
      %v1226 = vpop.f32.mrf.mxu0
      %v1227 = vpop.f32.mrf.mxu0
      %v1228 = vadd.f32 %v218, %v1227
      %v1229 = vpop.f32.mrf.mxu0
      %1230 = vmatprep.mubr.bf16.mxu0 0
      %1231 = vmatmul.mubr.bf16.gmra.mxu0 %v1137
      %v1232 = vpop.f32.mrf.mxu0
      %v1233 = vadd.f32 %v218, %v1232
      %v1234 = vpop.f32.mrf.mxu0
      %v1235 = vpop.f32.mrf.mxu0
      %v1236 = vadd.f32 %v218, %v1235
      %v1237 = vpop.f32.mrf.mxu0
      %1238 = vmatprep.mubr.bf16.mxu0 0
      %1239 = vmatmul.mubr.bf16.gmra.mxu0 %v1138
      %v1240 = vpop.f32.mrf.mxu0
      %v1241 = vadd.f32 %v218, %v1240
      %v1242 = vpop.f32.mrf.mxu0
      %v1243 = vpop.f32.mrf.mxu0
      %v1244 = vadd.f32 %v218, %v1243
      %v1245 = vpop.f32.mrf.mxu0
      %1246 = vmatprep.mubr.bf16.mxu0 0
      %1247 = vmatmul.mubr.bf16.gmra.mxu0 %v1139
      %v1248 = vpop.f32.mrf.mxu0
      %v1249 = vadd.f32 %v218, %v1248
      %v1250 = vpop.f32.mrf.mxu0
      %v1251 = vpop.f32.mrf.mxu0
      %v1252 = vadd.f32 %v218, %v1251
      %v1253 = vpop.f32.mrf.mxu0
      %1254 = vmatprep.mubr.bf16.mxu0 0
      %1255 = vmatmul.mubr.bf16.gmra.mxu0 %v1140
      %v1256 = vpop.f32.mrf.mxu0
      %v1257 = vadd.f32 %v218, %v1256
      %v1258 = vpop.f32.mrf.mxu0
      %v1259 = vpop.f32.mrf.mxu0
      %v1260 = vadd.f32 %v218, %v1259
      %v1261 = vpop.f32.mrf.mxu0
      %1262 = vmatprep.mubr.bf16.mxu0 0
      %1263 = vmatmul.mubr.bf16.gmra.mxu0 %v1141
      %v1264 = vpop.f32.mrf.mxu0
      %v1265 = vadd.f32 %v218, %v1264
      %v1266 = vpop.f32.mrf.mxu0
      %v1267 = vpop.f32.mrf.mxu0
      %v1268 = vadd.f32 %v218, %v1267
      %v1269 = vpop.f32.mrf.mxu0
      %1270 = vmatprep.mubr.bf16.mxu0 0
      %1271 = vmatmul.mubr.bf16.gmra.mxu0 %v1142
      %v1272 = vpop.f32.mrf.mxu0
      %v1273 = vadd.f32 %v218, %v1272
      %v1274 = vpop.f32.mrf.mxu0
      %v1275 = vpop.f32.mrf.mxu0
      %v1276 = vadd.f32 %v218, %v1275
      %v1277 = vpop.f32.mrf.mxu0
      %1278 = vmatprep.mubr.bf16.mxu0 0
      %1279 = vmatmul.mubr.bf16.gmra.mxu0 %v1143
      %v1280 = vpop.f32.mrf.mxu0
      %v1281 = vadd.f32 %v218, %v1280
      %v1282 = vpop.f32.mrf.mxu0
      %v1283 = vpop.f32.mrf.mxu0
      %v1284 = vadd.f32 %v218, %v1283
      %v1285 = vpop.f32.mrf.mxu0
      %1286 = vmatprep.mubr.bf16.mxu0 0
      %1287 = vmatmul.mubr.bf16.gmra.mxu0 %v1144
      %v1288 = vpop.f32.mrf.mxu0
      %v1289 = vadd.f32 %v218, %v1288
      %v1290 = vpop.f32.mrf.mxu0
      %v1291 = vpop.f32.mrf.mxu0
      %v1292 = vpop.f32.mrf.mxu0
      %1293 = vdwg.mxu0
      %v1294 = vmax.f32 %v1193, 0.0
      %v1295 = vmax.f32 %v1196, 0.0
      %v1296 = vmax.f32 %v1201, 0.0
      %v1297 = vmax.f32 %v1204, 0.0
      %v1298 = vmax.f32 %v1209, 0.0
      %v1299 = vmax.f32 %v1212, 0.0
      %v1300 = vmax.f32 %v1217, 0.0
      %v1301 = vmax.f32 %v1220, 0.0
      %v1302 = vmax.f32 %v1225, 0.0
      %v1303 = vmax.f32 %v1228, 0.0
      %v1304 = vmax.f32 %v1233, 0.0
      %v1305 = vmax.f32 %v1236, 0.0
      %v1306 = vmax.f32 %v1241, 0.0
      %v1307 = vmax.f32 %v1244, 0.0
      %v1308 = vmax.f32 %v1249, 0.0
      %v1309 = vmax.f32 %v1252, 0.0
      %v1310 = vmax.f32 %v1257, 0.0
      %v1311 = vmax.f32 %v1260, 0.0
      %v1312 = vmax.f32 %v1265, 0.0
      %v1313 = vmax.f32 %v1268, 0.0
      %v1314 = vmax.f32 %v1273, 0.0
      %v1315 = vmax.f32 %v1276, 0.0
      %v1316 = vmax.f32 %v1281, 0.0
      %v1317 = vmax.f32 %v1284, 0.0
      %v1318 = vmax.f32 %v1289, 0.0
      %v1319 = vmax.f32 %v1031, %v1294
      %v1320 = vmax.f32 %v1032, %v1295
      %v1321 = vmax.f32 %v1033, %v1296
      %v1322 = vmax.f32 %v1034, %v1297
      %v1323 = vmax.f32 %v1035, %v1298
      %v1324 = vmax.f32 %v1036, %v1299
      %v1325 = vmax.f32 %v1037, %v1300
      %v1326 = vmax.f32 %v1038, %v1301
      %v1327 = vmax.f32 %v1039, %v1302
      %v1328 = vmax.f32 %v1040, %v1303
      %v1329 = vmax.f32 %v1041, %v1304
      %v1330 = vmax.f32 %v1042, %v1305
      %v1331 = vmax.f32 %v1043, %v1306
      %v1332 = vmax.f32 %v1044, %v1307
      %v1333 = vmax.f32 %v1045, %v1308
      %v1334 = vmax.f32 %v1046, %v1309
      %v1335 = vmax.f32 %v1047, %v1310
      %v1336 = vmax.f32 %v1048, %v1311
      %v1337 = vmax.f32 %v1049, %v1312
      %v1338 = vmax.f32 %v1050, %v1313
      %v1339 = vmax.f32 %v1051, %v1314
      %v1340 = vmax.f32 %v1052, %v1315
      %v1341 = vmax.f32 %v1053, %v1316
      %v1342 = vmax.f32 %v1054, %v1317
      %v1343 = vmax.f32 %v1055, %v1318
      %v1344 = vmax.f32 %v768, %v1319
      %v1345 = vmax.f32 %v769, %v1320
      %v1346 = vmax.f32 %v770, %v1321
      %v1347 = vmax.f32 %v771, %v1322
      %v1348 = vmax.f32 %v772, %v1323
      %v1349 = vmax.f32 %v773, %v1324
      %v1350 = vmax.f32 %v774, %v1325
      %v1351 = vmax.f32 %v775, %v1326
      %v1352 = vmax.f32 %v776, %v1327
      %v1353 = vmax.f32 %v777, %v1328
      %v1354 = vmax.f32 %v778, %v1329
      %v1355 = vmax.f32 %v779, %v1330
      %v1356 = vmax.f32 %v780, %v1331
      %v1357 = vmax.f32 %v781, %v1332
      %v1358 = vmax.f32 %v782, %v1333
      %v1359 = vmax.f32 %v783, %v1334
      %v1360 = vmax.f32 %v784, %v1335
      %v1361 = vmax.f32 %v785, %v1336
      %v1362 = vmax.f32 %v786, %v1337
      %v1363 = vmax.f32 %v787, %v1338
      %v1364 = vmax.f32 %v788, %v1339
      %v1365 = vmax.f32 %v789, %v1340
      %v1366 = vmax.f32 %v790, %v1341
      %v1367 = vmax.f32 %v791, %v1342
      %v1368 = vmax.f32 %v792, %v1343
      %v1369 = vpack.c.bf16 %v1345, %v1344
      %v1370 = vpack.c.bf16 %v1347, %v1346
      %v1371 = vpack.c.bf16 %v1349, %v1348
      %v1372 = vpack.c.bf16 %v1351, %v1350
      %v1373 = vpack.c.bf16 %v1353, %v1352
      %v1374 = vpack.c.bf16 %v1355, %v1354
      %v1375 = vpack.c.bf16 %v1357, %v1356
      %v1376 = vpack.c.bf16 %v1359, %v1358
      %v1377 = vpack.c.bf16 %v1361, %v1360
      %v1378 = vpack.c.bf16 %v1363, %v1362
      %v1379 = vpack.c.bf16 %v1365, %v1364
      %v1380 = vpack.c.bf16 %v1367, %v1366
      %v1381 = vpack.c.bf16 %v1368, %v1368
      %v1395 = vunpack.c.l.b16 %v1369
      %v1396 = vunpack.c.h.b16 %v1369
      %v1397 = vunpack.c.l.b16 %v1370
      %v1398 = vunpack.c.h.b16 %v1370
      %v1399 = vunpack.c.l.b16 %v1371
      %v1400 = vunpack.c.h.b16 %v1371
      %v1401 = vunpack.c.l.b16 %v1372
      %v1402 = vunpack.c.h.b16 %v1372
      %v1403 = vunpack.c.l.b16 %v1373
      %v1404 = vunpack.c.h.b16 %v1373
      %v1405 = vunpack.c.l.b16 %v1374
      %v1406 = vunpack.c.h.b16 %v1374
      %v1407 = vunpack.c.l.b16 %v1375
      %v1408 = vunpack.c.h.b16 %v1375
      %v1409 = vunpack.c.l.b16 %v1376
      %v1410 = vunpack.c.h.b16 %v1376
      %v1411 = vunpack.c.l.b16 %v1377
      %v1412 = vunpack.c.h.b16 %v1377
      %v1413 = vunpack.c.l.b16 %v1378
      %v1414 = vunpack.c.h.b16 %v1378
      %v1415 = vunpack.c.l.b16 %v1379
      %v1416 = vunpack.c.h.b16 %v1379
      %v1417 = vunpack.c.l.b16 %v1380
      %v1418 = vunpack.c.h.b16 %v1380
      %v1419 = vunpack.c.l.b16 %v1381
      %v1420 = vpack.c.b16 %v1395, %v1395
      %v1421 = vpack.c.b16 %v1396, %v1396
      %v1422 = vpack.c.b16 %v1397, %v1397
      %v1423 = vpack.c.b16 %v1398, %v1398
      %v1424 = vpack.c.b16 %v1399, %v1399
      %v1425 = vpack.c.b16 %v1400, %v1400
      %v1426 = vpack.c.b16 %v1401, %v1401
      %v1427 = vpack.c.b16 %v1402, %v1402
      %v1428 = vpack.c.b16 %v1403, %v1403
      %v1429 = vpack.c.b16 %v1404, %v1404
      %v1430 = vpack.c.b16 %v1405, %v1405
      %v1431 = vpack.c.b16 %v1406, %v1406
      %v1432 = vpack.c.b16 %v1407, %v1407
      %v1433 = vpack.c.b16 %v1408, %v1408
      %v1434 = vpack.c.b16 %v1409, %v1409
      %v1435 = vpack.c.b16 %v1410, %v1410
      %v1436 = vpack.c.b16 %v1411, %v1411
      %v1437 = vpack.c.b16 %v1412, %v1412
      %v1438 = vpack.c.b16 %v1413, %v1413
      %v1439 = vpack.c.b16 %v1414, %v1414
      %v1440 = vpack.c.b16 %v1415, %v1415
      %v1441 = vpack.c.b16 %v1416, %v1416
      %v1442 = vpack.c.b16 %v1417, %v1417
      %v1443 = vpack.c.b16 %v1418, %v1418
      %v1444 = vpack.c.b16 %v1419, %v1419
      %1470 = vst [vmem:[%s170] sm:$0xf] %v1420
      %1471 = vst [vmem:[%s170 + $0x4] sm:$0xf] %v1421
      %1472 = vst [vmem:[%s170 + $0x8] sm:$0xf] %v1422
      %1473 = vst [vmem:[%s170 + $0xc] sm:$0xf] %v1423
      %1474 = vst [vmem:[%s170 + $0x10] sm:$0xf] %v1424
      %1475 = vst [vmem:[%s170 + $0x14] sm:$0xf] %v1425
      %1476 = vst [vmem:[%s170 + $0x18] sm:$0xf] %v1426
      %1477 = vst [vmem:[%s170 + $0x1c] sm:$0xf] %v1427
      %1478 = vst [vmem:[%s170 + $0x20] sm:$0xf] %v1428
      %1479 = vst [vmem:[%s170 + $0x24] sm:$0xf] %v1429
      %1480 = vst [vmem:[%s170 + $0x28] sm:$0xf] %v1430
      %1481 = vst [vmem:[%s170 + $0x2c] sm:$0xf] %v1431
      %1482 = vst [vmem:[%s170 + $0x30] sm:$0xf] %v1432
      %1483 = vst [vmem:[%s170 + $0x34] sm:$0xf] %v1433
      %1484 = vst [vmem:[%s170 + $0x38] sm:$0xf] %v1434
      %1485 = vst [vmem:[%s170 + $0x3c] sm:$0xf] %v1435
      %1486 = vst [vmem:[%s170 + $0x40] sm:$0xf] %v1436
      %1487 = vst [vmem:[%s170 + $0x44] sm:$0xf] %v1437
      %1488 = vst [vmem:[%s170 + $0x48] sm:$0xf] %v1438
      %1489 = vst [vmem:[%s170 + $0x4c] sm:$0xf] %v1439
      %1490 = vst [vmem:[%s170 + $0x50] sm:$0xf] %v1440
      %1491 = vst [vmem:[%s170 + $0x54] sm:$0xf] %v1441
      %1492 = vst [vmem:[%s170 + $0x58] sm:$0xf] %v1442
      %1493 = vst [vmem:[%s170 + $0x5c] sm:$0xf] %v1443
      %1494 = vst [vmem:[%s170 + $0x60] sm:$0x3] %v1444
      %p1495 = scmp.lt.s32.totalorder %s14, 1
      %s1496 = scalar_select %p1495, %s14, 1
      %s1497 = smul.addr %s1496, 25
      %s1498 = smul.addr %s1497, 4
      %s1499 = scalar_lea.vmem %s3, %s1498
      // Predicated region
      $region33: #{lenet_forward.3} parent=31 // pred_check
        %p1500 = pneg %p100
      $region34: #{lenet_forward.3} parent=31 // pred_check_branch
        %1502 = sbr.rel (%p1500) target = $region36
      $region35: #{lenet_forward.3} parent=31 // pred_region
        _
      $region36: #{lenet_forward.3} parent=31 // pred_fallthru
        _
    $region32: #{lenet_forward.3} parent=5 // pred_fallthru
      _
    %p1503 = scmp.le.s32.totalorder 2, %s9
    // Predicated region
    $region37: #{lenet_forward.3} parent=5 // pred_check
      %p1504 = pneg %p1503
    $region38: #{lenet_forward.3} parent=5 // pred_check_branch
      %1506 = sbr.rel (%p1504) target = $region40
    $region39: #{lenet_forward.3} parent=5 // pred_region
      %s1507 = ssub.s32 %s9, 2
      // Predicated region
      $region41: #{lenet_forward.3} parent=39 // pred_check
        %p1508 = pneg %p106
      $region42: #{lenet_forward.3} parent=39 // pred_check_branch
        %1510 = sbr.rel (%p1508) target = $region44
      $region43: #{lenet_forward.3} parent=39 // pred_region
        %p1511 = scmp.lt.s32.totalorder %s15, 1
        %s1512 = scalar_select %p1511, %s15, 1
        %s1513 = smul.addr %s1512, 25
        %s1514 = smul.addr %s1513, 4
        %s1515 = scalar_lea.vmem %s3, %s1514
      $region44: #{lenet_forward.3} parent=39 // pred_fallthru
        _
    $region40: #{lenet_forward.3} parent=5 // pred_fallthru
      _
  $region6: #{lenet_forward.3} parent=0 // loop_footer
    %s13 = sadd.s32 1, %s9
  $region7: #{lenet_forward.3} parent=0 // loop_footer_branch
    %8 = sbr.rel target = $region3
  $region8: #{lenet_forward.3} parent=0 // loop_exit
    _

// kernel: lenet_forward.4
$region0: #{lenet_forward.4}
  #allocation0 [shape = 'u32[]', space=smem, size = 0x4, offset = 0x4, fixed_abs, tag = 'smem constant byte address 0x4 - core index']
  #allocation1 [shape = 'u32[144,128]{1,0:T(1,128)}', space=vmem, size = 0x12000, scoped, tag = 'internal scratch']
  %s0 = inlined_call_operand.vmem [shape: bf16[2,4,25,256], index: 0, kind: input, shape index: {}]
  %s1 = inlined_call_operand.vmem [shape: bf16[256,128], index: 1, kind: input, shape index: {}]
  %s2 = inlined_call_operand.vmem [shape: f32[1,128], index: 2, kind: input, shape index: {}]
  %s3 = inlined_call_operand.vmem [shape: bf16[2,25,128], index: 3, kind: output, shape index: {}]
  %s4 = sld [smem:[#allocation0]]
  $region45: #{lenet_forward.4} parent=0
    _
  %s6 = ssub.s32 1, %s4
  %s7 = scalar_select 0, %s6, %s4
  loop: start=0, step=1, limit=4
  $region2: #{lenet_forward.4} parent=0 // loop_pre_header
    _
  $region3: #{lenet_forward.4} parent=0 // loop_header
    %s9 = sphi 0, %s13
    %p10 = scmp.ge.s32.totalorder %s9, 4
    %s19 = sphi 0, %s21
    %s22 = sphi 0, %s19
    %s23 = sphi 0, %s22
    %s39 = sphi 0, %s23
    %s43 = sphi 0, %s43
    %s45 = sphi 0, %s43
    %s46 = sphi 0, %s45
    %s60 = sphi 0, %s46
    %s64 = sphi 0, %s64
    %s66 = sphi 0, %s64
    %s67 = sphi 0, %s66
    %s81 = sphi 0, %s67
    %s87 = sphi 0, %s89
    %s90 = sphi 0, %s87
    %s91 = sphi 0, %s90
    %s107 = sphi 0, %s91
  $region4: #{lenet_forward.4} parent=0 // loop_header_branch
    %12 = sbr.rel (%p10) target = $region8
  $region5: #{lenet_forward.4} parent=0 // loop_body
    %s14 = ssub.s32 %s9, 1
    %s15 = ssub.s32 %s9, 2
    %s16 = sadd.s32 %s9, 1
    %s17 = ssub.s32 %s9, %s16
    %p18 = scmp.eq.s32.totalorder %s17, 0
    %s20 = sadd.s32 %s19, 1
    %s21 = scalar_select %p18, %s19, %s20
    %p24 = pneg %p18
    %p25 = scmp.eq.s32.totalorder %s9, 1
    %p26 = por %p24, %p25
    %p27 = scmp.ne.s32.totalorder %s19, %s22
    %p28 = scmp.eq.s32.totalorder %s9, 0
    %p29 = por %p27, %p28
    %p30 = scmp.ne.s32.totalorder %s19, %s22
    %p31 = scmp.eq.s32.totalorder %s14, 1
    %p32 = por %p30, %p31
    %p33 = scmp.ne.s32.totalorder %s22, %s23
    %p34 = scmp.eq.s32.totalorder %s14, 0
    %p35 = por %p33, %p34
    %p36 = scmp.ne.s32.totalorder %s22, %s23
    %p37 = scmp.eq.s32.totalorder %s15, 1
    %p38 = por %p36, %p37
    %p40 = scmp.ne.s32.totalorder %s23, %s39
    %p41 = scmp.eq.s32.totalorder %s15, 0
    %p42 = por %p40, %p41
    %s44 = sadd.s32 %s43, 1
    %p47 = scmp.eq.s32.totalorder %s9, 1
    %p48 = scmp.ne.s32.totalorder %s43, %s45
    %p49 = scmp.eq.s32.totalorder %s9, 0
    %p50 = por %p48, %p49
    %p51 = scmp.ne.s32.totalorder %s43, %s45
    %p52 = scmp.eq.s32.totalorder %s14, 1
    %p53 = por %p51, %p52
    %p54 = scmp.ne.s32.totalorder %s45, %s46
    %p55 = scmp.eq.s32.totalorder %s14, 0
    %p56 = por %p54, %p55
    %p57 = scmp.ne.s32.totalorder %s45, %s46
    %p58 = scmp.eq.s32.totalorder %s15, 1
    %p59 = por %p57, %p58
    %p61 = scmp.ne.s32.totalorder %s46, %s60
    %p62 = scmp.eq.s32.totalorder %s15, 0
    %p63 = por %p61, %p62
    %s65 = sadd.s32 %s64, 1
    %p68 = scmp.eq.s32.totalorder %s9, 1
    %p69 = scmp.ne.s32.totalorder %s64, %s66
    %p70 = scmp.eq.s32.totalorder %s9, 0
    %p71 = por %p69, %p70
    %p72 = scmp.ne.s32.totalorder %s64, %s66
    %p73 = scmp.eq.s32.totalorder %s14, 1
    %p74 = por %p72, %p73
    %p75 = scmp.ne.s32.totalorder %s66, %s67
    %p76 = scmp.eq.s32.totalorder %s14, 0
    %p77 = por %p75, %p76
    %p78 = scmp.ne.s32.totalorder %s66, %s67
    %p79 = scmp.eq.s32.totalorder %s15, 1
    %p80 = por %p78, %p79
    %p82 = scmp.ne.s32.totalorder %s67, %s81
    %p83 = scmp.eq.s32.totalorder %s15, 0
    %p84 = por %p82, %p83
    %s85 = ssub.s32 %s9, %s16
    %p86 = scmp.eq.s32.totalorder %s85, 0
    %s88 = sadd.s32 %s87, 1
    %s89 = scalar_select %p86, %s87, %s88
    %p92 = pneg %p86
    %p93 = scmp.eq.s32.totalorder %s9, 1
    %p94 = por %p92, %p93
    %p95 = scmp.ne.s32.totalorder %s87, %s90
    %p96 = scmp.eq.s32.totalorder %s9, 0
    %p97 = por %p95, %p96
    %p98 = scmp.ne.s32.totalorder %s87, %s90
    %p99 = scmp.eq.s32.totalorder %s14, 1
    %p100 = por %p98, %p99
    %p101 = scmp.ne.s32.totalorder %s90, %s91
    %p102 = scmp.eq.s32.totalorder %s14, 0
    %p103 = por %p101, %p102
    %p104 = scmp.ne.s32.totalorder %s90, %s91
    %p105 = scmp.eq.s32.totalorder %s15, 1
    %p106 = por %p104, %p105
    %p108 = scmp.ne.s32.totalorder %s91, %s107
    %p109 = scmp.eq.s32.totalorder %s15, 0
    %p110 = por %p108, %p109
    %p111 = scmp.le.s32.totalorder 1, %s9
    %p112 = scmp.lt.s32.totalorder %s9, 3
    %p113 = pnand %p111, %p112
    %p114 = pneg %p113
    // Predicated region
    $region9: #{lenet_forward.4} parent=5 // pred_check
      _
    $region10: #{lenet_forward.4} parent=5 // pred_check_branch
      %116 = sbr.rel (%p113) target = $region12
    $region11: #{lenet_forward.4} parent=5 // pred_region
      %s117 = ssub.s32 %s9, 1
      // Predicated region
      $region13: #{lenet_forward.4} parent=11 // pred_check
        %p118 = pneg %p56
      $region14: #{lenet_forward.4} parent=11 // pred_check_branch
        %120 = sbr.rel (%p118) target = $region16
      $region15: #{lenet_forward.4} parent=11 // pred_region
        _
      $region16: #{lenet_forward.4} parent=11 // pred_fallthru
        _
      // Predicated region
      $region17: #{lenet_forward.4} parent=11 // pred_check
        %p121 = pneg %p77
      $region18: #{lenet_forward.4} parent=11 // pred_check_branch
        %123 = sbr.rel (%p121) target = $region20
      $region19: #{lenet_forward.4} parent=11 // pred_region
        _
      $region20: #{lenet_forward.4} parent=11 // pred_fallthru
        _
    $region12: #{lenet_forward.4} parent=5 // pred_fallthru
      _
    %p124 = scmp.lt.s32.totalorder %s9, 2
    // Predicated region
    $region21: #{lenet_forward.4} parent=5 // pred_check
      %p125 = pneg %p124
    $region22: #{lenet_forward.4} parent=5 // pred_check_branch
      %127 = sbr.rel (%p125) target = $region24
    $region23: #{lenet_forward.4} parent=5 // pred_region
      // Predicated region
      $region25: #{lenet_forward.4} parent=23 // pred_check
        %p128 = pneg %p29
      $region26: #{lenet_forward.4} parent=23 // pred_check_branch
        %130 = sbr.rel (%p128) target = $region28
      $region27: #{lenet_forward.4} parent=23 // pred_region
        %p131 = scmp.lt.s32.totalorder %s9, 1
        %s132 = scalar_select %p131, %s9, 1
        %s133 = smul.addr %s132, 32
        %s134 = smul.addr %s133, 4
        %s135 = scalar_lea.vmem %s0, %s134
      $region28: #{lenet_forward.4} parent=23 // pred_fallthru
        _
    $region24: #{lenet_forward.4} parent=5 // pred_fallthru
      _
    %p136 = scmp.le.s32.totalorder 1, %s9
    %p137 = scmp.lt.s32.totalorder %s9, 3
    %p138 = pnand %p136, %p137
    %p139 = pneg %p138
    // Predicated region
    $region29: #{lenet_forward.4} parent=5 // pred_check
      _
    $region30: #{lenet_forward.4} parent=5 // pred_check_branch
      %141 = sbr.rel (%p138) target = $region32
    $region31: #{lenet_forward.4} parent=5 // pred_region
      %s142 = ssub.s32 %s9, 1
      %p143 = scmp.lt.s32.totalorder %s14, 1
      %s144 = scalar_select %p143, %s14, 1
      %s145 = smul.addr %s144, 32
      %s146 = smul.addr %s145, 4
      %s147 = scalar_lea.vmem %s0, %s146
      %p148 = pneg %p35
      %p149 = pneg %p32
      %p150 = pneg %p56
      %p151 = pneg %p53
      %p152 = pneg %p77
      %p153 = pneg %p74
      %p154 = pneg %p103
      %p155 = pneg %p100
      %p156 = scmp.lt.s32.totalorder %s14, 1
      %s157 = scalar_select %p156, %s14, 1
      %s158 = smul.addr %s157, 4
      %s159 = smul.addr %s158, 4
      %s160 = scalar_lea.vmem %s3, %s159
      %p161 = scmp.lt.s32.totalorder %s14, 1
      %s162 = scalar_select %p161, %s14, 1
      %s163 = smul.addr %s162, 32
      %s164 = smul.addr %s163, 4
      %s165 = scalar_lea.vmem %s0, %s164
      %p166 = scmp.lt.s32.totalorder %s14, 1
      %s167 = scalar_select %p166, %s14, 1
      %s168 = smul.addr %s167, 4
      %s169 = smul.addr %s168, 4
      %s170 = scalar_lea.vmem %s3, %s169
      %v172 = vld [vmem:[%s165] sm:$0xff]
      %v173 = vld [vmem:[%s165 + $0x8] sm:$0xff]
      %v174 = vld [vmem:[%s165 + $0x10] sm:$0xff]
      %v175 = vld [vmem:[%s165 + $0x18] sm:$0x11]
      %v176 = vld [vmem:[%s1] sm:$0xf]
      %v177 = vld [vmem:[%s1 + $0x4] sm:$0xf]
      %v178 = vld [vmem:[%s1 + $0x8] sm:$0xf]
      %v179 = vld [vmem:[%s1 + $0xc] sm:$0xf]
      %v180 = vld [vmem:[%s1 + $0x10] sm:$0xf]
      %v181 = vld [vmem:[%s1 + $0x14] sm:$0xf]
      %v182 = vld [vmem:[%s1 + $0x18] sm:$0xf]
      %v183 = vld [vmem:[%s1 + $0x1c] sm:$0xf]
      %v184 = vld [vmem:[%s1 + $0x20] sm:$0xf]
      %v185 = vld [vmem:[%s1 + $0x24] sm:$0xf]
      %v186 = vld [vmem:[%s1 + $0x28] sm:$0xf]
      %v187 = vld [vmem:[%s1 + $0x2c] sm:$0xf]
      %v188 = vld [vmem:[%s1 + $0x30] sm:$0xf]
      %v189 = vld [vmem:[%s1 + $0x34] sm:$0xf]
      %v190 = vld [vmem:[%s1 + $0x38] sm:$0xf]
      %v191 = vld [vmem:[%s1 + $0x3c] sm:$0xf]
      %v192 = vld [vmem:[%s1 + $0x40] sm:$0xf]
      %v193 = vld [vmem:[%s1 + $0x44] sm:$0xf]
      %v194 = vld [vmem:[%s1 + $0x48] sm:$0xf]
      %v195 = vld [vmem:[%s1 + $0x4c] sm:$0xf]
      %v196 = vld [vmem:[%s1 + $0x50] sm:$0xf]
      %v197 = vld [vmem:[%s1 + $0x54] sm:$0xf]
      %v198 = vld [vmem:[%s1 + $0x58] sm:$0xf]
      %v199 = vld [vmem:[%s1 + $0x5c] sm:$0xf]
      %v200 = vld [vmem:[%s1 + $0x60] sm:$0xf]
      %v201 = vld [vmem:[%s1 + $0x64] sm:$0xf]
      %v202 = vld [vmem:[%s1 + $0x68] sm:$0xf]
      %v203 = vld [vmem:[%s1 + $0x6c] sm:$0xf]
      %v204 = vld [vmem:[%s1 + $0x70] sm:$0xf]
      %v205 = vld [vmem:[%s1 + $0x74] sm:$0xf]
      %v206 = vld [vmem:[%s1 + $0x78] sm:$0xf]
      %v207 = vld [vmem:[%s1 + $0x7c] sm:$0xf]
      %v208 = vld [vmem:[%s2] sm:$0x1]
      %v210 = vlaneseq
      %v211 = vshrl.u32 %v210, 7
      %v212 = vsub.s32 0, %v211
      %v213 = vrot.slane %v208, %v212
      %v219 = vunpack.c.l.b16 %v172
      %v220 = vunpack.c.h.b16 %v172
      %v221 = vunpack.c.l.b16 %v173
      %v222 = vunpack.c.h.b16 %v173
      %v223 = vunpack.c.l.b16 %v174
      %v224 = vunpack.c.h.b16 %v174
      %v225 = vunpack.c.l.b16 %v175
      %v226 = vunpack.c.h.b16 %v175
      %v227 = vpack.c.b16 %v221, %v219
      %v228 = vpack.c.b16 %v222, %v220
      %v229 = vpack.c.b16 %v225, %v223
      %v230 = vpack.c.b16 %v226, %v224
      %v267 = vunpack.c.l.b16 %v176
      %v268 = vunpack.c.l.b16 %v177
      %v269 = vunpack.c.l.b16 %v178
      %v270 = vunpack.c.l.b16 %v179
      %v271 = vunpack.c.l.b16 %v180
      %v272 = vunpack.c.l.b16 %v181
      %v273 = vunpack.c.l.b16 %v182
      %v274 = vunpack.c.l.b16 %v183
      %v275 = vunpack.c.l.b16 %v184
      %v276 = vunpack.c.l.b16 %v185
      %v277 = vunpack.c.l.b16 %v186
      %v278 = vunpack.c.l.b16 %v187
      %v279 = vunpack.c.l.b16 %v188
      %v280 = vunpack.c.l.b16 %v189
      %v281 = vunpack.c.l.b16 %v190
      %v282 = vunpack.c.l.b16 %v191
      %v283 = vunpack.c.l.b16 %v192
      %v284 = vunpack.c.l.b16 %v193
      %v285 = vunpack.c.l.b16 %v194
      %v286 = vunpack.c.l.b16 %v195
      %v287 = vunpack.c.l.b16 %v196
      %v288 = vunpack.c.l.b16 %v197
      %v289 = vunpack.c.l.b16 %v198
      %v290 = vunpack.c.l.b16 %v199
      %v291 = vunpack.c.l.b16 %v200
      %v292 = vunpack.c.l.b16 %v201
      %v293 = vunpack.c.l.b16 %v202
      %v294 = vunpack.c.l.b16 %v203
      %v295 = vunpack.c.l.b16 %v204
      %v296 = vunpack.c.l.b16 %v205
      %v297 = vunpack.c.l.b16 %v206
      %v298 = vunpack.c.l.b16 %v207
      %v299 = vpack.c.b16 %v268, %v267
      %v300 = vpack.c.b16 %v270, %v269
      %v301 = vpack.c.b16 %v272, %v271
      %v302 = vpack.c.b16 %v274, %v273
      %v303 = vpack.c.b16 %v276, %v275
      %v304 = vpack.c.b16 %v278, %v277
      %v305 = vpack.c.b16 %v280, %v279
      %v306 = vpack.c.b16 %v282, %v281
      %v307 = vpack.c.b16 %v284, %v283
      %v308 = vpack.c.b16 %v286, %v285
      %v309 = vpack.c.b16 %v288, %v287
      %v310 = vpack.c.b16 %v290, %v289
      %v311 = vpack.c.b16 %v292, %v291
      %v312 = vpack.c.b16 %v294, %v293
      %v313 = vpack.c.b16 %v296, %v295
      %v314 = vpack.c.b16 %v298, %v297
      %331 = vmatprep.subr.bf16.mxu0 0
      %332 = vmatpush1.bf16.msra.mxu0 %v306
      %333 = vmatprep.subr.bf16.mxu0 0
      %334 = vmatpush1.bf16.msra.mxu0 %v305
      %335 = vmatprep.subr.bf16.mxu0 0
      %336 = vmatpush1.bf16.msra.mxu0 %v304
      %337 = vmatprep.subr.bf16.mxu0 0
      %338 = vmatpush1.bf16.msra.mxu0 %v303
      %339 = vmatprep.subr.bf16.mxu0 0
      %340 = vmatpush1.bf16.msra.mxu0 %v302
      %341 = vmatprep.subr.bf16.mxu0 0
      %342 = vmatpush1.bf16.msra.mxu0 %v301
      %343 = vmatprep.subr.bf16.mxu0 0
      %344 = vmatpush1.bf16.msra.mxu0 %v300
      %345 = vmatprep.subr.bf16.mxu0 0
      %346 = vmatpush1.bf16.msra.mxu0 %v299
      %347 = vmatprep.subr.bf16.mxu0 0
      %348 = vmatpush2.bf16.msra.mxu0 %v314
      %349 = vmatprep.subr.bf16.mxu0 0
      %350 = vmatpush2.bf16.msra.mxu0 %v313
      %351 = vmatprep.subr.bf16.mxu0 0
      %352 = vmatpush2.bf16.msra.mxu0 %v312
      %353 = vmatprep.subr.bf16.mxu0 0
      %354 = vmatpush2.bf16.msra.mxu0 %v311
      %355 = vmatprep.subr.bf16.mxu0 0
      %356 = vmatpush2.bf16.msra.mxu0 %v310
      %357 = vmatprep.subr.bf16.mxu0 0
      %358 = vmatpush2.bf16.msra.mxu0 %v309
      %359 = vmatprep.subr.bf16.mxu0 0
      %360 = vmatpush2.bf16.msra.mxu0 %v308
      %361 = vmatprep.subr.bf16.mxu0 0
      %362 = vmatpush2.bf16.msra.mxu0 %v307
      %363 = vmatprep.mubr.bf16.mxu0 %v228
      %364 = vmatmul.mubr.bf16.gmra.mxu0 %v227
      %v365 = vpop.f32.mrf.mxu0
      %v366 = vadd.f32 %v213, %v365
      %v367 = vpop.f32.mrf.mxu0
      %v368 = vpop.f32.mrf.mxu0
      %v369 = vadd.f32 %v213, %v368
      %v370 = vpop.f32.mrf.mxu0
      %371 = vmatprep.mubr.bf16.mxu0 %v230
      %372 = vmatmul.mubr.bf16.gmra.mxu0 %v229
      %v373 = vpop.f32.mrf.mxu0
      %v374 = vadd.f32 %v213, %v373
      %v375 = vpop.f32.mrf.mxu0
      %v376 = vpop.f32.mrf.mxu0
      %v377 = vadd.f32 %v213, %v376
      %v378 = vpop.f32.mrf.mxu0
      %379 = vdwg.mxu0
      %v380 = vmax.f32 %v366, 0.0
      %v381 = vmax.f32 %v369, 0.0
      %v382 = vmax.f32 %v374, 0.0
      %v383 = vmax.f32 %v377, 0.0
      %s384 = scalar_lea.vmem %s165, 32
      %v385 = vld [vmem:[%s384] sm:$0xff]
      %v386 = vld [vmem:[%s384 + $0x8] sm:$0xff]
      %v387 = vld [vmem:[%s384 + $0x10] sm:$0xff]
      %v388 = vld [vmem:[%s384 + $0x18] sm:$0x11]
      %v393 = vunpack.c.l.b16 %v385
      %v394 = vunpack.c.h.b16 %v385
      %v395 = vunpack.c.l.b16 %v386
      %v396 = vunpack.c.h.b16 %v386
      %v397 = vunpack.c.l.b16 %v387
      %v398 = vunpack.c.h.b16 %v387
      %v399 = vunpack.c.l.b16 %v388
      %v400 = vunpack.c.h.b16 %v388
      %v401 = vpack.c.b16 %v395, %v393
      %v402 = vpack.c.b16 %v396, %v394
      %v403 = vpack.c.b16 %v399, %v397
      %v404 = vpack.c.b16 %v400, %v398
      %409 = vmatprep.subr.bf16.mxu0 0
      %410 = vmatpush1.bf16.msra.mxu0 %v306
      %411 = vmatprep.subr.bf16.mxu0 0
      %412 = vmatpush1.bf16.msra.mxu0 %v305
      %413 = vmatprep.subr.bf16.mxu0 0
      %414 = vmatpush1.bf16.msra.mxu0 %v304
      %415 = vmatprep.subr.bf16.mxu0 0
      %416 = vmatpush1.bf16.msra.mxu0 %v303
      %417 = vmatprep.subr.bf16.mxu0 0
      %418 = vmatpush1.bf16.msra.mxu0 %v302
      %419 = vmatprep.subr.bf16.mxu0 0
      %420 = vmatpush1.bf16.msra.mxu0 %v301
      %421 = vmatprep.subr.bf16.mxu0 0
      %422 = vmatpush1.bf16.msra.mxu0 %v300
      %423 = vmatprep.subr.bf16.mxu0 0
      %424 = vmatpush1.bf16.msra.mxu0 %v299
      %425 = vmatprep.subr.bf16.mxu0 0
      %426 = vmatpush2.bf16.msra.mxu0 %v314
      %427 = vmatprep.subr.bf16.mxu0 0
      %428 = vmatpush2.bf16.msra.mxu0 %v313
      %429 = vmatprep.subr.bf16.mxu0 0
      %430 = vmatpush2.bf16.msra.mxu0 %v312
      %431 = vmatprep.subr.bf16.mxu0 0
      %432 = vmatpush2.bf16.msra.mxu0 %v311
      %433 = vmatprep.subr.bf16.mxu0 0
      %434 = vmatpush2.bf16.msra.mxu0 %v310
      %435 = vmatprep.subr.bf16.mxu0 0
      %436 = vmatpush2.bf16.msra.mxu0 %v309
      %437 = vmatprep.subr.bf16.mxu0 0
      %438 = vmatpush2.bf16.msra.mxu0 %v308
      %439 = vmatprep.subr.bf16.mxu0 0
      %440 = vmatpush2.bf16.msra.mxu0 %v307
      %441 = vmatprep.mubr.bf16.mxu0 %v402
      %442 = vmatmul.mubr.bf16.gmra.mxu0 %v401
      %v443 = vpop.f32.mrf.mxu0
      %v444 = vadd.f32 %v213, %v443
      %v445 = vpop.f32.mrf.mxu0
      %v446 = vpop.f32.mrf.mxu0
      %v447 = vadd.f32 %v213, %v446
      %v448 = vpop.f32.mrf.mxu0
      %449 = vmatprep.mubr.bf16.mxu0 %v404
      %450 = vmatmul.mubr.bf16.gmra.mxu0 %v403
      %v451 = vpop.f32.mrf.mxu0
      %v452 = vadd.f32 %v213, %v451
      %v453 = vpop.f32.mrf.mxu0
      %v454 = vpop.f32.mrf.mxu0
      %v455 = vadd.f32 %v213, %v454
      %v456 = vpop.f32.mrf.mxu0
      %457 = vdwg.mxu0
      %v458 = vmax.f32 %v444, 0.0
      %v459 = vmax.f32 %v447, 0.0
      %v460 = vmax.f32 %v452, 0.0
      %v461 = vmax.f32 %v455, 0.0
      %v462 = vmax.f32 %v380, %v458
      %v463 = vmax.f32 %v381, %v459
      %v464 = vmax.f32 %v382, %v460
      %v465 = vmax.f32 %v383, %v461
      %s466 = scalar_lea.vmem %s165, 64
      %v467 = vld [vmem:[%s466] sm:$0xff]
      %v468 = vld [vmem:[%s466 + $0x8] sm:$0xff]
      %v469 = vld [vmem:[%s466 + $0x10] sm:$0xff]
      %v470 = vld [vmem:[%s466 + $0x18] sm:$0x11]
      %v475 = vunpack.c.l.b16 %v467
      %v476 = vunpack.c.h.b16 %v467
      %v477 = vunpack.c.l.b16 %v468
      %v478 = vunpack.c.h.b16 %v468
      %v479 = vunpack.c.l.b16 %v469
      %v480 = vunpack.c.h.b16 %v469
      %v481 = vunpack.c.l.b16 %v470
      %v482 = vunpack.c.h.b16 %v470
      %v483 = vpack.c.b16 %v477, %v475
      %v484 = vpack.c.b16 %v478, %v476
      %v485 = vpack.c.b16 %v481, %v479
      %v486 = vpack.c.b16 %v482, %v480
      %491 = vmatprep.subr.bf16.mxu0 0
      %492 = vmatpush1.bf16.msra.mxu0 %v306
      %493 = vmatprep.subr.bf16.mxu0 0
      %494 = vmatpush1.bf16.msra.mxu0 %v305
      %495 = vmatprep.subr.bf16.mxu0 0
      %496 = vmatpush1.bf16.msra.mxu0 %v304
      %497 = vmatprep.subr.bf16.mxu0 0
      %498 = vmatpush1.bf16.msra.mxu0 %v303
      %499 = vmatprep.subr.bf16.mxu0 0
      %500 = vmatpush1.bf16.msra.mxu0 %v302
      %501 = vmatprep.subr.bf16.mxu0 0
      %502 = vmatpush1.bf16.msra.mxu0 %v301
      %503 = vmatprep.subr.bf16.mxu0 0
      %504 = vmatpush1.bf16.msra.mxu0 %v300
      %505 = vmatprep.subr.bf16.mxu0 0
      %506 = vmatpush1.bf16.msra.mxu0 %v299
      %507 = vmatprep.subr.bf16.mxu0 0
      %508 = vmatpush2.bf16.msra.mxu0 %v314
      %509 = vmatprep.subr.bf16.mxu0 0
      %510 = vmatpush2.bf16.msra.mxu0 %v313
      %511 = vmatprep.subr.bf16.mxu0 0
      %512 = vmatpush2.bf16.msra.mxu0 %v312
      %513 = vmatprep.subr.bf16.mxu0 0
      %514 = vmatpush2.bf16.msra.mxu0 %v311
      %515 = vmatprep.subr.bf16.mxu0 0
      %516 = vmatpush2.bf16.msra.mxu0 %v310
      %517 = vmatprep.subr.bf16.mxu0 0
      %518 = vmatpush2.bf16.msra.mxu0 %v309
      %519 = vmatprep.subr.bf16.mxu0 0
      %520 = vmatpush2.bf16.msra.mxu0 %v308
      %521 = vmatprep.subr.bf16.mxu0 0
      %522 = vmatpush2.bf16.msra.mxu0 %v307
      %523 = vmatprep.mubr.bf16.mxu0 %v484
      %524 = vmatmul.mubr.bf16.gmra.mxu0 %v483
      %v525 = vpop.f32.mrf.mxu0
      %v526 = vadd.f32 %v213, %v525
      %v527 = vpop.f32.mrf.mxu0
      %v528 = vpop.f32.mrf.mxu0
      %v529 = vadd.f32 %v213, %v528
      %v530 = vpop.f32.mrf.mxu0
      %531 = vmatprep.mubr.bf16.mxu0 %v486
      %532 = vmatmul.mubr.bf16.gmra.mxu0 %v485
      %v533 = vpop.f32.mrf.mxu0
      %v534 = vadd.f32 %v213, %v533
      %v535 = vpop.f32.mrf.mxu0
      %v536 = vpop.f32.mrf.mxu0
      %v537 = vadd.f32 %v213, %v536
      %v538 = vpop.f32.mrf.mxu0
      %539 = vdwg.mxu0
      %v540 = vmax.f32 %v526, 0.0
      %v541 = vmax.f32 %v529, 0.0
      %v542 = vmax.f32 %v534, 0.0
      %v543 = vmax.f32 %v537, 0.0
      %s544 = scalar_lea.vmem %s165, 96
      %v545 = vld [vmem:[%s544] sm:$0xff]
      %v546 = vld [vmem:[%s544 + $0x8] sm:$0xff]
      %v547 = vld [vmem:[%s544 + $0x10] sm:$0xff]
      %v548 = vld [vmem:[%s544 + $0x18] sm:$0x11]
      %v553 = vunpack.c.l.b16 %v545
      %v554 = vunpack.c.h.b16 %v545
      %v555 = vunpack.c.l.b16 %v546
      %v556 = vunpack.c.h.b16 %v546
      %v557 = vunpack.c.l.b16 %v547
      %v558 = vunpack.c.h.b16 %v547
      %v559 = vunpack.c.l.b16 %v548
      %v560 = vunpack.c.h.b16 %v548
      %v561 = vpack.c.b16 %v555, %v553
      %v562 = vpack.c.b16 %v556, %v554
      %v563 = vpack.c.b16 %v559, %v557
      %v564 = vpack.c.b16 %v560, %v558
      %569 = vmatprep.subr.bf16.mxu0 0
      %570 = vmatpush1.bf16.msra.mxu0 %v306
      %571 = vmatprep.subr.bf16.mxu0 0
      %572 = vmatpush1.bf16.msra.mxu0 %v305
      %573 = vmatprep.subr.bf16.mxu0 0
      %574 = vmatpush1.bf16.msra.mxu0 %v304
      %575 = vmatprep.subr.bf16.mxu0 0
      %576 = vmatpush1.bf16.msra.mxu0 %v303
      %577 = vmatprep.subr.bf16.mxu0 0
      %578 = vmatpush1.bf16.msra.mxu0 %v302
      %579 = vmatprep.subr.bf16.mxu0 0
      %580 = vmatpush1.bf16.msra.mxu0 %v301
      %581 = vmatprep.subr.bf16.mxu0 0
      %582 = vmatpush1.bf16.msra.mxu0 %v300
      %583 = vmatprep.subr.bf16.mxu0 0
      %584 = vmatpush1.bf16.msra.mxu0 %v299
      %585 = vmatprep.subr.bf16.mxu0 0
      %586 = vmatpush2.bf16.msra.mxu0 %v314
      %587 = vmatprep.subr.bf16.mxu0 0
      %588 = vmatpush2.bf16.msra.mxu0 %v313
      %589 = vmatprep.subr.bf16.mxu0 0
      %590 = vmatpush2.bf16.msra.mxu0 %v312
      %591 = vmatprep.subr.bf16.mxu0 0
      %592 = vmatpush2.bf16.msra.mxu0 %v311
      %593 = vmatprep.subr.bf16.mxu0 0
      %594 = vmatpush2.bf16.msra.mxu0 %v310
      %595 = vmatprep.subr.bf16.mxu0 0
      %596 = vmatpush2.bf16.msra.mxu0 %v309
      %597 = vmatprep.subr.bf16.mxu0 0
      %598 = vmatpush2.bf16.msra.mxu0 %v308
      %599 = vmatprep.subr.bf16.mxu0 0
      %600 = vmatpush2.bf16.msra.mxu0 %v307
      %601 = vmatprep.mubr.bf16.mxu0 %v562
      %602 = vmatmul.mubr.bf16.gmra.mxu0 %v561
      %v603 = vpop.f32.mrf.mxu0
      %v604 = vadd.f32 %v213, %v603
      %v605 = vpop.f32.mrf.mxu0
      %v606 = vpop.f32.mrf.mxu0
      %v607 = vadd.f32 %v213, %v606
      %v608 = vpop.f32.mrf.mxu0
      %609 = vmatprep.mubr.bf16.mxu0 %v564
      %610 = vmatmul.mubr.bf16.gmra.mxu0 %v563
      %v611 = vpop.f32.mrf.mxu0
      %v612 = vadd.f32 %v213, %v611
      %v613 = vpop.f32.mrf.mxu0
      %v614 = vpop.f32.mrf.mxu0
      %v615 = vadd.f32 %v213, %v614
      %v616 = vpop.f32.mrf.mxu0
      %617 = vdwg.mxu0
      %v618 = vmax.f32 %v604, 0.0
      %v619 = vmax.f32 %v607, 0.0
      %v620 = vmax.f32 %v612, 0.0
      %v621 = vmax.f32 %v615, 0.0
      %v622 = vmax.f32 %v540, %v618
      %v623 = vmax.f32 %v541, %v619
      %v624 = vmax.f32 %v542, %v620
      %v625 = vmax.f32 %v543, %v621
      %v626 = vmax.f32 %v462, %v622
      %v627 = vmax.f32 %v463, %v623
      %v628 = vmax.f32 %v464, %v624
      %v629 = vmax.f32 %v465, %v625
      %v630 = vpack.c.bf16 %v627, %v626
      %v631 = vpack.c.bf16 %v629, %v628
      %v634 = vunpack.c.l.b16 %v630
      %v635 = vunpack.c.h.b16 %v630
      %v636 = vunpack.c.l.b16 %v631
      %v637 = vunpack.c.h.b16 %v631
      %v638 = vpack.c.b16 %v634, %v634
      %v639 = vpack.c.b16 %v635, %v635
      %v640 = vpack.c.b16 %v636, %v636
      %v641 = vpack.c.b16 %v637, %v637
      %646 = vst [vmem:[%s170] sm:$0xf] %v638
      %647 = vst [vmem:[%s170 + $0x4] sm:$0xf] %v639
      %648 = vst [vmem:[%s170 + $0x8] sm:$0xf] %v640
      %vm649 = vcmask 1040384
      %vm650 = vsmask.f32 256
      %vm651 = vmand %vm649, %vm650
      %v652 = vld [vmem:[%s170 + $0xc] sm:$0x1]
      %v653 = vsel %vm651, %v641, %v652
      %654 = vst [vmem:[%s170 + $0xc] sm:$0x1] %v653
      %p655 = scmp.lt.s32.totalorder %s14, 1
      %s656 = scalar_select %p655, %s14, 1
      %s657 = smul.addr %s656, 4
      %s658 = smul.addr %s657, 4
      %s659 = scalar_lea.vmem %s3, %s658
      // Predicated region
      $region33: #{lenet_forward.4} parent=31 // pred_check
        %p660 = pneg %p100
      $region34: #{lenet_forward.4} parent=31 // pred_check_branch
        %662 = sbr.rel (%p660) target = $region36
      $region35: #{lenet_forward.4} parent=31 // pred_region
        _
      $region36: #{lenet_forward.4} parent=31 // pred_fallthru
        _
    $region32: #{lenet_forward.4} parent=5 // pred_fallthru
      _
    %p663 = scmp.le.s32.totalorder 2, %s9
    // Predicated region
    $region37: #{lenet_forward.4} parent=5 // pred_check
      %p664 = pneg %p663
    $region38: #{lenet_forward.4} parent=5 // pred_check_branch
      %666 = sbr.rel (%p664) target = $region40
    $region39: #{lenet_forward.4} parent=5 // pred_region
      %s667 = ssub.s32 %s9, 2
      // Predicated region
      $region41: #{lenet_forward.4} parent=39 // pred_check
        %p668 = pneg %p106
      $region42: #{lenet_forward.4} parent=39 // pred_check_branch
        %670 = sbr.rel (%p668) target = $region44
      $region43: #{lenet_forward.4} parent=39 // pred_region
        %p671 = scmp.lt.s32.totalorder %s15, 1
        %s672 = scalar_select %p671, %s15, 1
        %s673 = smul.addr %s672, 4
        %s674 = smul.addr %s673, 4
        %s675 = scalar_lea.vmem %s3, %s674
      $region44: #{lenet_forward.4} parent=39 // pred_fallthru
        _
    $region40: #{lenet_forward.4} parent=5 // pred_fallthru
      _
  $region6: #{lenet_forward.4} parent=0 // loop_footer
    %s13 = sadd.s32 1, %s9
  $region7: #{lenet_forward.4} parent=0 // loop_footer_branch
    %8 = sbr.rel target = $region3
  $region8: #{lenet_forward.4} parent=0 // loop_exit
    _

// kernel: lenet_forward.5
$region0: #{lenet_forward.5}
  #allocation0 [shape = 'u32[]', space=smem, size = 0x4, offset = 0x4, fixed_abs, tag = 'smem constant byte address 0x4 - core index']
  #allocation1 [shape = 'u32[144,128]{1,0:T(1,128)}', space=vmem, size = 0x12000, scoped, tag = 'internal scratch']
  %s0 = inlined_call_operand.vmem [shape: bf16[2,512], index: 0, kind: input, shape index: {}]
  %s1 = inlined_call_operand.vmem [shape: bf16[512,128], index: 1, kind: input, shape index: {}]
  %s2 = inlined_call_operand.vmem [shape: f32[1,128], index: 2, kind: input, shape index: {}]
  %s3 = inlined_call_operand.vmem [shape: bf16[128,128], index: 3, kind: input, shape index: {}]
  %s4 = inlined_call_operand.vmem [shape: f32[1,128], index: 4, kind: input, shape index: {}]
  %s5 = inlined_call_operand.vmem [shape: bf16[128,128], index: 5, kind: input, shape index: {}]
  %s6 = inlined_call_operand.vmem [shape: f32[1,128], index: 6, kind: input, shape index: {}]
  %s7 = inlined_call_operand.hbm [shape: f32[2,128], index: 7, kind: output, shape index: {}]
  %s8 = sld [smem:[#allocation0]]
  $region38: #{lenet_forward.5} parent=0
    _
  %s10 = ssub.s32 1, %s8
  %s11 = scalar_select 0, %s10, %s8
  $region1: #{lenet_forward.5} parent=0
    #allocation2 [shape = 'u8[1024]{0}', space=vmem, size = 0x400, scoped, tag = 'output window, operand 0, single buffered']
    #allocation3 [shape = 's32[1]{0}', space=sflag, size = 0x4, scoped, tag = 'scoped memory for lenet_forward.5']
    %12 = vsyncpa [#allocation3], 0
    // Predicated region
    $region2: #{lenet_forward.5} parent=1 // pred_check
      _
    $region3: #{lenet_forward.5} parent=1 // pred_check_branch
      %14 = sbr.rel (0) target = $region5
    $region4: #{lenet_forward.5} parent=1 // pred_region
      _
    $region5: #{lenet_forward.5} parent=1 // pred_fallthru
      _
    // Predicated region
    $region6: #{lenet_forward.5} parent=1 // pred_check
      _
    $region7: #{lenet_forward.5} parent=1 // pred_check_branch
      %16 = sbr.rel (0) target = $region9
    $region8: #{lenet_forward.5} parent=1 // pred_region
      _
    $region9: #{lenet_forward.5} parent=1 // pred_fallthru
      _
    // Predicated region
    $region10: #{lenet_forward.5} parent=1 // pred_check
      _
    $region11: #{lenet_forward.5} parent=1 // pred_check_branch
      %18 = sbr.rel (0) target = $region13
    $region12: #{lenet_forward.5} parent=1 // pred_region
      _
    $region13: #{lenet_forward.5} parent=1 // pred_fallthru
      _
    // Predicated region
    $region14: #{lenet_forward.5} parent=1 // pred_check
      _
    $region15: #{lenet_forward.5} parent=1 // pred_check_branch
      %20 = sbr.rel (0) target = $region17
    $region16: #{lenet_forward.5} parent=1 // pred_region
      _
    $region17: #{lenet_forward.5} parent=1 // pred_fallthru
      _
    // Predicated region
    $region18: #{lenet_forward.5} parent=1 // pred_check
      _
    $region19: #{lenet_forward.5} parent=1 // pred_check_branch
      %22 = sbr.rel (0) target = $region21
    $region20: #{lenet_forward.5} parent=1 // pred_region
      _
    $region21: #{lenet_forward.5} parent=1 // pred_fallthru
      _
    // Predicated region
    $region22: #{lenet_forward.5} parent=1 // pred_check
      _
    $region23: #{lenet_forward.5} parent=1 // pred_check_branch
      %24 = sbr.rel (0) target = $region25
    $region24: #{lenet_forward.5} parent=1 // pred_region
      _
    $region25: #{lenet_forward.5} parent=1 // pred_fallthru
      _
    // Predicated region
    $region26: #{lenet_forward.5} parent=1 // pred_check
      _
    $region27: #{lenet_forward.5} parent=1 // pred_check_branch
      %26 = sbr.rel (0) target = $region29
    $region28: #{lenet_forward.5} parent=1 // pred_region
      _
    $region29: #{lenet_forward.5} parent=1 // pred_fallthru
      _
    %v28 = vld [vmem:[%s0] sm:$0xf]
    %v29 = vld [vmem:[%s1] sm:$0xf]
    %v30 = vld [vmem:[%s1 + $0x4] sm:$0xf]
    %v31 = vld [vmem:[%s1 + $0x8] sm:$0xf]
    %v32 = vld [vmem:[%s1 + $0xc] sm:$0xf]
    %v33 = vld [vmem:[%s1 + $0x10] sm:$0xf]
    %v34 = vld [vmem:[%s1 + $0x14] sm:$0xf]
    %v35 = vld [vmem:[%s1 + $0x18] sm:$0xf]
    %v36 = vld [vmem:[%s1 + $0x1c] sm:$0xf]
    %v37 = vld [vmem:[%s1 + $0x20] sm:$0xf]
    %v38 = vld [vmem:[%s1 + $0x24] sm:$0xf]
    %v39 = vld [vmem:[%s1 + $0x28] sm:$0xf]
    %v40 = vld [vmem:[%s1 + $0x2c] sm:$0xf]
    %v41 = vld [vmem:[%s1 + $0x30] sm:$0xf]
    %v42 = vld [vmem:[%s1 + $0x34] sm:$0xf]
    %v43 = vld [vmem:[%s1 + $0x38] sm:$0xf]
    %v44 = vld [vmem:[%s1 + $0x3c] sm:$0xf]
    %v45 = vld [vmem:[%s1 + $0x40] sm:$0xf]
    %v46 = vld [vmem:[%s1 + $0x44] sm:$0xf]
    %v47 = vld [vmem:[%s1 + $0x48] sm:$0xf]
    %v48 = vld [vmem:[%s1 + $0x4c] sm:$0xf]
    %v49 = vld [vmem:[%s1 + $0x50] sm:$0xf]
    %v50 = vld [vmem:[%s1 + $0x54] sm:$0xf]
    %v51 = vld [vmem:[%s1 + $0x58] sm:$0xf]
    %v52 = vld [vmem:[%s1 + $0x5c] sm:$0xf]
    %v53 = vld [vmem:[%s1 + $0x60] sm:$0xf]
    %v54 = vld [vmem:[%s1 + $0x64] sm:$0xf]
    %v55 = vld [vmem:[%s1 + $0x68] sm:$0xf]
    %v56 = vld [vmem:[%s1 + $0x6c] sm:$0xf]
    %v57 = vld [vmem:[%s1 + $0x70] sm:$0xf]
    %v58 = vld [vmem:[%s1 + $0x74] sm:$0xf]
    %v59 = vld [vmem:[%s1 + $0x78] sm:$0xf]
    %v60 = vld [vmem:[%s1 + $0x7c] sm:$0xf]
    %v61 = vld [vmem:[%s1 + $0x80] sm:$0xf]
    %v62 = vld [vmem:[%s1 + $0x84] sm:$0xf]
    %v63 = vld [vmem:[%s1 + $0x88] sm:$0xf]
    %v64 = vld [vmem:[%s1 + $0x8c] sm:$0xf]
    %v65 = vld [vmem:[%s1 + $0x90] sm:$0xf]
    %v66 = vld [vmem:[%s1 + $0x94] sm:$0xf]
    %v67 = vld [vmem:[%s1 + $0x98] sm:$0xf]
    %v68 = vld [vmem:[%s1 + $0x9c] sm:$0xf]
    %v69 = vld [vmem:[%s1 + $0xa0] sm:$0xf]
    %v70 = vld [vmem:[%s1 + $0xa4] sm:$0xf]
    %v71 = vld [vmem:[%s1 + $0xa8] sm:$0xf]
    %v72 = vld [vmem:[%s1 + $0xac] sm:$0xf]
    %v73 = vld [vmem:[%s1 + $0xb0] sm:$0xf]
    %v74 = vld [vmem:[%s1 + $0xb4] sm:$0xf]
    %v75 = vld [vmem:[%s1 + $0xb8] sm:$0xf]
    %v76 = vld [vmem:[%s1 + $0xbc] sm:$0xf]
    %v77 = vld [vmem:[%s1 + $0xc0] sm:$0xf]
    %v78 = vld [vmem:[%s1 + $0xc4] sm:$0xf]
    %v79 = vld [vmem:[%s1 + $0xc8] sm:$0xf]
    %v80 = vld [vmem:[%s1 + $0xcc] sm:$0xf]
    %v81 = vld [vmem:[%s1 + $0xd0] sm:$0xf]
    %v82 = vld [vmem:[%s1 + $0xd4] sm:$0xf]
    %v83 = vld [vmem:[%s1 + $0xd8] sm:$0xf]
    %v84 = vld [vmem:[%s1 + $0xdc] sm:$0xf]
    %v85 = vld [vmem:[%s1 + $0xe0] sm:$0xf]
    %v86 = vld [vmem:[%s1 + $0xe4] sm:$0xf]
    %v87 = vld [vmem:[%s1 + $0xe8] sm:$0xf]
    %v88 = vld [vmem:[%s1 + $0xec] sm:$0xf]
    %v89 = vld [vmem:[%s1 + $0xf0] sm:$0xf]
    %v90 = vld [vmem:[%s1 + $0xf4] sm:$0xf]
    %v91 = vld [vmem:[%s1 + $0xf8] sm:$0xf]
    %v92 = vld [vmem:[%s1 + $0xfc] sm:$0xf]
    %v93 = vld [vmem:[%s2] sm:$0x1]
    %v95 = vlaneseq
    %v96 = vshrl.u32 %v95, 7
    %v97 = vsub.s32 0, %v96
    %v98 = vrot.slane %v93, %v97
    %v102 = vunpack.c.l.s4 1966171168
    %v103 = vunpack.c.0.s8 %v102
    %v104 = vlaneseq
    %v105 = vshrl.u32 %v104, 7
    %v106 = vsub.s32 %v103, %v105
    %v107 = vrot.slane %v28, %v106
    %v108 = vcombine.high %v107, %v107
    %v110 = vunpack.c.l.s4 1966171168
    %v111 = vunpack.c.0.s8 %v110
    %v112 = vlaneseq
    %v113 = vshrl.u32 %v112, 7
    %v114 = vsub.s32 %v111, %v113
    %v115 = vrot.slane %v107, %v114
    %v117 = vunpack.c.l.s4 1966171168
    %v118 = vunpack.c.0.s8 %v117
    %v119 = vlaneseq
    %v120 = vshrl.u32 %v119, 7
    %v121 = vsub.s32 %v118, %v120
    %v122 = vrot.slane %v108, %v121
    %v123 = vcombine.high %v115, %v115
    %v124 = vcombine.high %v122, %v122
    %v193 = vunpack.c.l.b16 %v29
    %v194 = vunpack.c.l.b16 %v30
    %v195 = vunpack.c.l.b16 %v31
    %v196 = vunpack.c.l.b16 %v32
    %v197 = vunpack.c.l.b16 %v33
    %v198 = vunpack.c.l.b16 %v34
    %v199 = vunpack.c.l.b16 %v35
    %v200 = vunpack.c.l.b16 %v36
    %v201 = vunpack.c.l.b16 %v37
    %v202 = vunpack.c.l.b16 %v38
    %v203 = vunpack.c.l.b16 %v39
    %v204 = vunpack.c.l.b16 %v40
    %v205 = vunpack.c.l.b16 %v41
    %v206 = vunpack.c.l.b16 %v42
    %v207 = vunpack.c.l.b16 %v43
    %v208 = vunpack.c.l.b16 %v44
    %v209 = vunpack.c.l.b16 %v45
    %v210 = vunpack.c.l.b16 %v46
    %v211 = vunpack.c.l.b16 %v47
    %v212 = vunpack.c.l.b16 %v48
    %v213 = vunpack.c.l.b16 %v49
    %v214 = vunpack.c.l.b16 %v50
    %v215 = vunpack.c.l.b16 %v51
    %v216 = vunpack.c.l.b16 %v52
    %v217 = vunpack.c.l.b16 %v53
    %v218 = vunpack.c.l.b16 %v54
    %v219 = vunpack.c.l.b16 %v55
    %v220 = vunpack.c.l.b16 %v56
    %v221 = vunpack.c.l.b16 %v57
    %v222 = vunpack.c.l.b16 %v58
    %v223 = vunpack.c.l.b16 %v59
    %v224 = vunpack.c.l.b16 %v60
    %v225 = vunpack.c.l.b16 %v61
    %v226 = vunpack.c.l.b16 %v62
    %v227 = vunpack.c.l.b16 %v63
    %v228 = vunpack.c.l.b16 %v64
    %v229 = vunpack.c.l.b16 %v65
    %v230 = vunpack.c.l.b16 %v66
    %v231 = vunpack.c.l.b16 %v67
    %v232 = vunpack.c.l.b16 %v68
    %v233 = vunpack.c.l.b16 %v69
    %v234 = vunpack.c.l.b16 %v70
    %v235 = vunpack.c.l.b16 %v71
    %v236 = vunpack.c.l.b16 %v72
    %v237 = vunpack.c.l.b16 %v73
    %v238 = vunpack.c.l.b16 %v74
    %v239 = vunpack.c.l.b16 %v75
    %v240 = vunpack.c.l.b16 %v76
    %v241 = vunpack.c.l.b16 %v77
    %v242 = vunpack.c.l.b16 %v78
    %v243 = vunpack.c.l.b16 %v79
    %v244 = vunpack.c.l.b16 %v80
    %v245 = vunpack.c.l.b16 %v81
    %v246 = vunpack.c.l.b16 %v82
    %v247 = vunpack.c.l.b16 %v83
    %v248 = vunpack.c.l.b16 %v84
    %v249 = vunpack.c.l.b16 %v85
    %v250 = vunpack.c.l.b16 %v86
    %v251 = vunpack.c.l.b16 %v87
    %v252 = vunpack.c.l.b16 %v88
    %v253 = vunpack.c.l.b16 %v89
    %v254 = vunpack.c.l.b16 %v90
    %v255 = vunpack.c.l.b16 %v91
    %v256 = vunpack.c.l.b16 %v92
    %v257 = vpack.c.b16 %v194, %v193
    %v258 = vpack.c.b16 %v196, %v195
    %v259 = vpack.c.b16 %v198, %v197
    %v260 = vpack.c.b16 %v200, %v199
    %v261 = vpack.c.b16 %v202, %v201
    %v262 = vpack.c.b16 %v204, %v203
    %v263 = vpack.c.b16 %v206, %v205
    %v264 = vpack.c.b16 %v208, %v207
    %v265 = vpack.c.b16 %v210, %v209
    %v266 = vpack.c.b16 %v212, %v211
    %v267 = vpack.c.b16 %v214, %v213
    %v268 = vpack.c.b16 %v216, %v215
    %v269 = vpack.c.b16 %v218, %v217
    %v270 = vpack.c.b16 %v220, %v219
    %v271 = vpack.c.b16 %v222, %v221
    %v272 = vpack.c.b16 %v224, %v223
    %v273 = vpack.c.b16 %v226, %v225
    %v274 = vpack.c.b16 %v228, %v227
    %v275 = vpack.c.b16 %v230, %v229
    %v276 = vpack.c.b16 %v232, %v231
    %v277 = vpack.c.b16 %v234, %v233
    %v278 = vpack.c.b16 %v236, %v235
    %v279 = vpack.c.b16 %v238, %v237
    %v280 = vpack.c.b16 %v240, %v239
    %v281 = vpack.c.b16 %v242, %v241
    %v282 = vpack.c.b16 %v244, %v243
    %v283 = vpack.c.b16 %v246, %v245
    %v284 = vpack.c.b16 %v248, %v247
    %v285 = vpack.c.b16 %v250, %v249
    %v286 = vpack.c.b16 %v252, %v251
    %v287 = vpack.c.b16 %v254, %v253
    %v288 = vpack.c.b16 %v256, %v255
    %321 = vmatprep.subr.bf16.mxu0 0
    %322 = vmatpush1.bf16.msra.mxu0 %v264
    %323 = vmatprep.subr.bf16.mxu0 0
    %324 = vmatpush1.bf16.msra.mxu0 %v263
    %325 = vmatprep.subr.bf16.mxu0 0
    %326 = vmatpush1.bf16.msra.mxu0 %v262
    %327 = vmatprep.subr.bf16.mxu0 0
    %328 = vmatpush1.bf16.msra.mxu0 %v261
    %329 = vmatprep.subr.bf16.mxu0 0
    %330 = vmatpush1.bf16.msra.mxu0 %v260
    %331 = vmatprep.subr.bf16.mxu0 0
    %332 = vmatpush1.bf16.msra.mxu0 %v259
    %333 = vmatprep.subr.bf16.mxu0 0
    %334 = vmatpush1.bf16.msra.mxu0 %v258
    %335 = vmatprep.subr.bf16.mxu0 0
    %336 = vmatpush1.bf16.msra.mxu0 %v257
    %337 = vmatprep.subr.bf16.mxu0 0
    %338 = vmatpush2.bf16.msra.mxu0 %v272
    %339 = vmatprep.subr.bf16.mxu0 0
    %340 = vmatpush2.bf16.msra.mxu0 %v271
    %341 = vmatprep.subr.bf16.mxu0 0
    %342 = vmatpush2.bf16.msra.mxu0 %v270
    %343 = vmatprep.subr.bf16.mxu0 0
    %344 = vmatpush2.bf16.msra.mxu0 %v269
    %345 = vmatprep.subr.bf16.mxu0 0
    %346 = vmatpush2.bf16.msra.mxu0 %v268
    %347 = vmatprep.subr.bf16.mxu0 0
    %348 = vmatpush2.bf16.msra.mxu0 %v267
    %349 = vmatprep.subr.bf16.mxu0 0
    %350 = vmatpush2.bf16.msra.mxu0 %v266
    %351 = vmatprep.subr.bf16.mxu0 0
    %352 = vmatpush2.bf16.msra.mxu0 %v265
    %353 = vmatprep.mubr.bf16.mxu0 %v122
    %354 = vmatmul.mubr.bf16.gmra.mxu0 %v115
    %v355 = vpop.f32.mrf.mxu0
    %v356 = vadd.f32 %v98, %v355
    %v357 = vpop.f32.mrf.mxu0
    %v358 = vpop.f32.mrf.mxu0
    %v359 = vpop.f32.mrf.mxu0
    %360 = vdwg.mxu0
    %361 = vmatprep.subr.bf16.mxu0 0
    %362 = vmatpush1.bf16.msra.mxu0 %v280
    %363 = vmatprep.subr.bf16.mxu0 0
    %364 = vmatpush1.bf16.msra.mxu0 %v279
    %365 = vmatprep.subr.bf16.mxu0 0
    %366 = vmatpush1.bf16.msra.mxu0 %v278
    %367 = vmatprep.subr.bf16.mxu0 0
    %368 = vmatpush1.bf16.msra.mxu0 %v277
    %369 = vmatprep.subr.bf16.mxu0 0
    %370 = vmatpush1.bf16.msra.mxu0 %v276
    %371 = vmatprep.subr.bf16.mxu0 0
    %372 = vmatpush1.bf16.msra.mxu0 %v275
    %373 = vmatprep.subr.bf16.mxu0 0
    %374 = vmatpush1.bf16.msra.mxu0 %v274
    %375 = vmatprep.subr.bf16.mxu0 0
    %376 = vmatpush1.bf16.msra.mxu0 %v273
    %377 = vmatprep.subr.bf16.mxu0 0
    %378 = vmatpush2.bf16.msra.mxu0 %v288
    %379 = vmatprep.subr.bf16.mxu0 0
    %380 = vmatpush2.bf16.msra.mxu0 %v287
    %381 = vmatprep.subr.bf16.mxu0 0
    %382 = vmatpush2.bf16.msra.mxu0 %v286
    %383 = vmatprep.subr.bf16.mxu0 0
    %384 = vmatpush2.bf16.msra.mxu0 %v285
    %385 = vmatprep.subr.bf16.mxu0 0
    %386 = vmatpush2.bf16.msra.mxu0 %v284
    %387 = vmatprep.subr.bf16.mxu0 0
    %388 = vmatpush2.bf16.msra.mxu0 %v283
    %389 = vmatprep.subr.bf16.mxu0 0
    %390 = vmatpush2.bf16.msra.mxu0 %v282
    %391 = vmatprep.subr.bf16.mxu0 0
    %392 = vmatpush2.bf16.msra.mxu0 %v281
    %393 = vmatprep.mubr.bf16.mxu0 %v124
    %394 = vmatmul.mubr.bf16.gmra.mxu0 %v123
    %v395 = vpop.f32.mrf.mxu0
    %v396 = vadd.f32 %v356, %v395
    %v397 = vpop.f32.mrf.mxu0
    %v398 = vpop.f32.mrf.mxu0
    %v399 = vpop.f32.mrf.mxu0
    %400 = vdwg.mxu0
    %v401 = vpack.c.bf16 %v396, %v396
    %v402 = vld [vmem:[%s3] sm:$0xf]
    %v403 = vld [vmem:[%s3 + $0x4] sm:$0xf]
    %v404 = vld [vmem:[%s3 + $0x8] sm:$0xf]
    %v405 = vld [vmem:[%s3 + $0xc] sm:$0xf]
    %v406 = vld [vmem:[%s3 + $0x10] sm:$0xf]
    %v407 = vld [vmem:[%s3 + $0x14] sm:$0xf]
    %v408 = vld [vmem:[%s3 + $0x18] sm:$0xf]
    %v409 = vld [vmem:[%s3 + $0x1c] sm:$0xf]
    %v410 = vld [vmem:[%s3 + $0x20] sm:$0xf]
    %v411 = vld [vmem:[%s3 + $0x24] sm:$0xf]
    %v412 = vld [vmem:[%s3 + $0x28] sm:$0xf]
    %v413 = vld [vmem:[%s3 + $0x2c] sm:$0xf]
    %v414 = vld [vmem:[%s3 + $0x30] sm:$0xf]
    %v415 = vld [vmem:[%s3 + $0x34] sm:$0xf]
    %v416 = vld [vmem:[%s3 + $0x38] sm:$0xf]
    %v417 = vld [vmem:[%s3 + $0x3c] sm:$0xf]
    %v418 = vld [vmem:[%s4] sm:$0x1]
    %v420 = vlaneseq
    %v421 = vshrl.u32 %v420, 7
    %v422 = vsub.s32 0, %v421
    %v423 = vrot.slane %v418, %v422
    %v441 = vunpack.c.l.b16 %v402
    %v442 = vunpack.c.l.b16 %v403
    %v443 = vunpack.c.l.b16 %v404
    %v444 = vunpack.c.l.b16 %v405
    %v445 = vunpack.c.l.b16 %v406
    %v446 = vunpack.c.l.b16 %v407
    %v447 = vunpack.c.l.b16 %v408
    %v448 = vunpack.c.l.b16 %v409
    %v449 = vunpack.c.l.b16 %v410
    %v450 = vunpack.c.l.b16 %v411
    %v451 = vunpack.c.l.b16 %v412
    %v452 = vunpack.c.l.b16 %v413
    %v453 = vunpack.c.l.b16 %v414
    %v454 = vunpack.c.l.b16 %v415
    %v455 = vunpack.c.l.b16 %v416
    %v456 = vunpack.c.l.b16 %v417
    %v457 = vpack.c.b16 %v442, %v441
    %v458 = vpack.c.b16 %v444, %v443
    %v459 = vpack.c.b16 %v446, %v445
    %v460 = vpack.c.b16 %v448, %v447
    %v461 = vpack.c.b16 %v450, %v449
    %v462 = vpack.c.b16 %v452, %v451
    %v463 = vpack.c.b16 %v454, %v453
    %v464 = vpack.c.b16 %v456, %v455
    %473 = vmatprep.subr.bf16.mxu0 0
    %474 = vmatpush1.bf16.msra.mxu0 %v464
    %475 = vmatprep.subr.bf16.mxu0 0
    %476 = vmatpush1.bf16.msra.mxu0 %v463
    %477 = vmatprep.subr.bf16.mxu0 0
    %478 = vmatpush1.bf16.msra.mxu0 %v462
    %479 = vmatprep.subr.bf16.mxu0 0
    %480 = vmatpush1.bf16.msra.mxu0 %v461
    %481 = vmatprep.subr.bf16.mxu0 0
    %482 = vmatpush1.bf16.msra.mxu0 %v460
    %483 = vmatprep.subr.bf16.mxu0 0
    %484 = vmatpush1.bf16.msra.mxu0 %v459
    %485 = vmatprep.subr.bf16.mxu0 0
    %486 = vmatpush1.bf16.msra.mxu0 %v458
    %487 = vmatprep.subr.bf16.mxu0 0
    %488 = vmatpush1.bf16.msra.mxu0 %v457
    %489 = vmatprep.subr.bf16.mxu0 0
    %490 = vmatpush2.bf16.msra.mxu0 0
    %491 = vmatprep.subr.bf16.mxu0 0
    %492 = vmatpush2.bf16.msra.mxu0 0
    %493 = vmatprep.subr.bf16.mxu0 0
    %494 = vmatpush2.bf16.msra.mxu0 0
    %495 = vmatprep.subr.bf16.mxu0 0
    %496 = vmatpush2.bf16.msra.mxu0 0
    %497 = vmatprep.subr.bf16.mxu0 0
    %498 = vmatpush2.bf16.msra.mxu0 0
    %499 = vmatprep.subr.bf16.mxu0 0
    %500 = vmatpush2.bf16.msra.mxu0 0
    %501 = vmatprep.subr.bf16.mxu0 0
    %502 = vmatpush2.bf16.msra.mxu0 0
    %503 = vmatprep.subr.bf16.mxu0 0
    %504 = vmatpush2.bf16.msra.mxu0 0
    %505 = vmatprep.mubr.bf16.mxu0 0
    %506 = vmatmul.mubr.bf16.gmra.mxu0 %v401
    %v507 = vpop.f32.mrf.mxu0
    %v508 = vadd.f32 %v423, %v507
    %v509 = vpop.f32.mrf.mxu0
    %v510 = vpop.f32.mrf.mxu0
    %v511 = vpop.f32.mrf.mxu0
    %512 = vdwg.mxu0
    %v513 = vpack.c.bf16 %v508, %v508
    %v514 = vld [vmem:[%s5] sm:$0xf]
    %v515 = vld [vmem:[%s5 + $0x4] sm:$0xf]
    %v516 = vld [vmem:[%s5 + $0x8] sm:$0xf]
    %v517 = vld [vmem:[%s5 + $0xc] sm:$0xf]
    %v518 = vld [vmem:[%s5 + $0x10] sm:$0xf]
    %v519 = vld [vmem:[%s5 + $0x14] sm:$0xf]
    %v520 = vld [vmem:[%s5 + $0x18] sm:$0xf]
    %v521 = vld [vmem:[%s5 + $0x1c] sm:$0xf]
    %v522 = vld [vmem:[%s5 + $0x20] sm:$0xf]
    %v523 = vld [vmem:[%s5 + $0x24] sm:$0xf]
    %v524 = vld [vmem:[%s5 + $0x28] sm:$0xf]
    %v525 = vld [vmem:[%s5 + $0x2c] sm:$0xf]
    %v526 = vld [vmem:[%s5 + $0x30] sm:$0xf]
    %v527 = vld [vmem:[%s5 + $0x34] sm:$0xf]
    %v528 = vld [vmem:[%s5 + $0x38] sm:$0xf]
    %v529 = vld [vmem:[%s5 + $0x3c] sm:$0xf]
    %v530 = vld [vmem:[%s6] sm:$0x1]
    %v532 = vlaneseq
    %v533 = vshrl.u32 %v532, 7
    %v534 = vsub.s32 0, %v533
    %v535 = vrot.slane %v530, %v534
    %v553 = vunpack.c.l.b16 %v514
    %v554 = vunpack.c.l.b16 %v515
    %v555 = vunpack.c.l.b16 %v516
    %v556 = vunpack.c.l.b16 %v517
    %v557 = vunpack.c.l.b16 %v518
    %v558 = vunpack.c.l.b16 %v519
    %v559 = vunpack.c.l.b16 %v520
    %v560 = vunpack.c.l.b16 %v521
    %v561 = vunpack.c.l.b16 %v522
    %v562 = vunpack.c.l.b16 %v523
    %v563 = vunpack.c.l.b16 %v524
    %v564 = vunpack.c.l.b16 %v525
    %v565 = vunpack.c.l.b16 %v526
    %v566 = vunpack.c.l.b16 %v527
    %v567 = vunpack.c.l.b16 %v528
    %v568 = vunpack.c.l.b16 %v529
    %v569 = vpack.c.b16 %v554, %v553
    %v570 = vpack.c.b16 %v556, %v555
    %v571 = vpack.c.b16 %v558, %v557
    %v572 = vpack.c.b16 %v560, %v559
    %v573 = vpack.c.b16 %v562, %v561
    %v574 = vpack.c.b16 %v564, %v563
    %v575 = vpack.c.b16 %v566, %v565
    %v576 = vpack.c.b16 %v568, %v567
    %585 = vmatprep.subr.bf16.mxu0 0
    %586 = vmatpush1.bf16.msra.mxu0 %v576
    %587 = vmatprep.subr.bf16.mxu0 0
    %588 = vmatpush1.bf16.msra.mxu0 %v575
    %589 = vmatprep.subr.bf16.mxu0 0
    %590 = vmatpush1.bf16.msra.mxu0 %v574
    %591 = vmatprep.subr.bf16.mxu0 0
    %592 = vmatpush1.bf16.msra.mxu0 %v573
    %593 = vmatprep.subr.bf16.mxu0 0
    %594 = vmatpush1.bf16.msra.mxu0 %v572
    %595 = vmatprep.subr.bf16.mxu0 0
    %596 = vmatpush1.bf16.msra.mxu0 %v571
    %597 = vmatprep.subr.bf16.mxu0 0
    %598 = vmatpush1.bf16.msra.mxu0 %v570
    %599 = vmatprep.subr.bf16.mxu0 0
    %600 = vmatpush1.bf16.msra.mxu0 %v569
    %601 = vmatprep.subr.bf16.mxu0 0
    %602 = vmatpush2.bf16.msra.mxu0 0
    %603 = vmatprep.subr.bf16.mxu0 0
    %604 = vmatpush2.bf16.msra.mxu0 0
    %605 = vmatprep.subr.bf16.mxu0 0
    %606 = vmatpush2.bf16.msra.mxu0 0
    %607 = vmatprep.subr.bf16.mxu0 0
    %608 = vmatpush2.bf16.msra.mxu0 0
    %609 = vmatprep.subr.bf16.mxu0 0
    %610 = vmatpush2.bf16.msra.mxu0 0
    %611 = vmatprep.subr.bf16.mxu0 0
    %612 = vmatpush2.bf16.msra.mxu0 0
    %613 = vmatprep.subr.bf16.mxu0 0
    %614 = vmatpush2.bf16.msra.mxu0 0
    %615 = vmatprep.subr.bf16.mxu0 0
    %616 = vmatpush2.bf16.msra.mxu0 0
    %617 = vmatprep.mubr.bf16.mxu0 0
    %618 = vmatmul.mubr.bf16.gmra.mxu0 %v513
    %v619 = vpop.f32.mrf.mxu0
    %v620 = vadd.f32 %v535, %v619
    %v621 = vpop.f32.mrf.mxu0
    %v622 = vpop.f32.mrf.mxu0
    %v623 = vpop.f32.mrf.mxu0
    %624 = vdwg.mxu0
    %625 = vst [vmem:[#allocation2] sm:$0x3] %v620
    // Predicated region
    $region30: #{lenet_forward.5} parent=1 // pred_check
      _
    $region31: #{lenet_forward.5} parent=1 // pred_check_branch
      %627 = sbr.rel (0) target = $region33
    $region32: #{lenet_forward.5} parent=1 // pred_region
      %s629 = ssub.s32 32, 32
      %630 = vsyncadd [#allocation3], %s629
      %s632 = sshll.u32 [#allocation2], 4
      %s633 = int_to_ptr.vmem [resolvable:$true] %s632
      %635 = dma.vmem_to_hbm [thread:$0]  %s633, 32, %s7, [#allocation3]
    $region33: #{lenet_forward.5} parent=1 // pred_fallthru
      _
    // Predicated region
    $region34: #{lenet_forward.5} parent=1 // pred_check
      _
    $region35: #{lenet_forward.5} parent=1 // pred_check_branch
      %637 = sbr.rel (0) target = $region37
    $region36: #{lenet_forward.5} parent=1 // pred_region
      %638 = dma.done [#allocation3], 32
    $region37: #{lenet_forward.5} parent=1 // pred_fallthru
      _
    %639 = vsyncpa [#allocation3], 1

</llo_original>
